<compile_context>
chip_gen: v7x
topology: tpu7x:2x2x1
jax: 0.10.0
libtpu: 0.0.40
codegen_flags: <defaults>
</compile_context>

<pallas_src>
import functools
from typing import NamedTuple, Tuple

import jax
import jax.numpy as jnp
from jax.experimental import pallas as pl
from jax.experimental.pallas import tpu as pltpu


# ---------------------------------------------------------------------------
# Constants / small helpers
# ---------------------------------------------------------------------------

_VMEM_SIZING_BUDGET = 24 * 1024 * 1024   # working-set budget used to pick tiles


def _round_up(x, m):
    return (x + m - 1) // m * m


def _pick_tile_m(m, per_row_bytes, resident_bytes, tm_cap):
    """Pick tm: multiple of 8, divides round_up(m,8), fits the VMEM budget.

    per_row_bytes / resident_bytes are raw (un-double-buffered) estimates.
    """
    mp = _round_up(max(int(m), 1), 8)
    budget = max(_VMEM_SIZING_BUDGET - 2 * resident_bytes, 16 * per_row_bytes)
    fit = min(tm_cap, mp, max(8, (budget // (2 * per_row_bytes)) // 8 * 8))
    # Prefer >= 2 grid steps when there is work to split (v7x has 2 TensorCores).
    if mp >= 16:
        fit = min(fit, _round_up(-(-mp // 2), 8))
    tm = 8
    for t in range(fit - fit % 8, 7, -8):   # largest multiple-of-8 divisor of mp
        if mp % t == 0:
            tm = t
            break
    return tm, mp


def _vmem_limit(tm, per_row_bytes, resident_bytes):
    ws = 2 * tm * per_row_bytes + 2 * resident_bytes   # double-buffered estimate
    return int(min(max(ws + (16 << 20), 32 << 20), 56 << 20))


def _compiler_params(vmem_bytes):
    return pltpu.CompilerParams(dimension_semantics=("parallel",),
                                vmem_limit_bytes=int(vmem_bytes))


# ---------------------------------------------------------------------------
# Pallas kernels
# ---------------------------------------------------------------------------

def _gemm_bias_act_kernel(x_ref, w_ref, b_ref, o_ref, *, relu):
    """o = [relu](x @ w + b); bf16 inputs, f32 MXU accumulation + f32 epilogue."""
    y = jnp.dot(x_ref[...], w_ref[...], preferred_element_type=jnp.float32)
    y = y + b_ref[...]
    if relu:
        y = jnp.maximum(y, 0.0)
    o_ref[...] = y.astype(o_ref.dtype)


def _fc_head_kernel(x_ref, w1_ref, b1_ref, w2_ref, b2_ref, o_ref, *, n_actions):
    """Fused fc1(ReLU) + fc2 (single wide MXU dot) + per-action softmax.

    fc2 weight layout: one 128-lane block per action, atoms in lanes [0, n_atoms);
    padded lanes carry bias -1e30 (zero weight columns) so exp underflows to 0.
    """
    h = jnp.dot(x_ref[...], w1_ref[...], preferred_element_type=jnp.float32)
    h = jnp.maximum(h + b1_ref[...], 0.0).astype(jnp.bfloat16)
    logits = jnp.dot(h, w2_ref[...], preferred_element_type=jnp.float32) + b2_ref[...]
    for a in range(n_actions):                      # static unroll; VPU/EUP only
        lo = a * 128
        blk = logits[:, lo:lo + 128]
        m = jnp.max(blk, axis=-1, keepdims=True)
        e = jnp.exp(blk - m)                        # padded lanes -> 0
        o_ref[:, lo:lo + 128] = e / jnp.sum(e, axis=-1, keepdims=True)   # exact


# ---------------------------------------------------------------------------
# Kernel wrappers (grid / BlockSpec plumbing)
# ---------------------------------------------------------------------------

def fused_linear(x, w, b, *, relu, out_dtype=jnp.bfloat16, tm_cap=512):
    """x: [M, K]; w: [K, N] bf16 (N % 128 == 0); b: [1, N] f32 -> [M, N]."""
    M, K = x.shape
    Kw, N = w.shape
    assert K == Kw and b.shape == (1, N) and N % 128 == 0
    out_bytes = jnp.dtype(out_dtype).itemsize
    per_row = K * 2 + N * out_bytes + N * 4          # x row + out row + f32 y row
    resident = K * N * 2 + N * 4
    tm, mp = _pick_tile_m(M, per_row, resident, tm_cap)
    xp = x.astype(jnp.bfloat16)
    if mp != M:
        xp = jnp.pad(xp, ((0, mp - M), (0, 0)))      # at most 7 rows of padding
    out = pl.pallas_call(
        functools.partial(_gemm_bias_act_kernel, relu=relu),
        out_shape=jax.ShapeDtypeStruct((mp, N), out_dtype),
        grid=(mp // tm,),
        in_specs=[
            pl.BlockSpec((tm, K), lambda i: (i, 0)),   # streamed activation tiles
            pl.BlockSpec((K, N), lambda i: (0, 0)),    # resident weight
            pl.BlockSpec((1, N), lambda i: (0, 0)),    # resident bias
        ],
        out_specs=pl.BlockSpec((tm, N), lambda i: (i, 0)),
        compiler_params=_compiler_params(_vmem_limit(tm, per_row, resident)),
        cost_estimate=pl.CostEstimate(
            flops=int(2 * mp * K * N), transcendentals=0,
            bytes_accessed=int(mp * K * 2 + K * N * 2 + N * 4 + mp * N * out_bytes)),
    )(xp, w, b)
    return out[:M] if mp != M else out


def fc_head(x, w1, b1, w2, b2, *, n_actions, n_atoms):
    """Fused fc1 + distributional head + softmax.

    x: [M, K1]; w1: [K1, H] bf16; b1: [1, H] f32; w2: [H, A*128] bf16;
    b2: [1, A*128] f32 (-1e30 on padded atom lanes) -> probs [M, A, n_atoms] f32.
    """
    M, K1 = x.shape
    H = w1.shape[1]
    N2 = w2.shape[1]
    assert w1.shape == (K1, H) and b1.shape == (1, H) and H % 128 == 0
    assert w2.shape == (H, N2) and b2.shape == (1, N2) and N2 == n_actions * 128
    per_row = K1 * 2 + N2 * 4 + H * 6 + N2 * 4       # x, out, h(f32+bf16), logits
    resident = K1 * H * 2 + H * 4 + H * N2 * 2 + N2 * 4
    tm, mp = _pick_tile_m(M, per_row, resident, tm_cap=256)   # f32 epilogue: keep tm small
    xp = x.astype(jnp.bfloat16)
    if mp != M:
        xp = jnp.pad(xp, ((0, mp - M), (0, 0)))
    out = pl.pallas_call(
        functools.partial(_fc_head_kernel, n_actions=n_actions),
        out_shape=jax.ShapeDtypeStruct((mp, N2), jnp.float32),
        grid=(mp // tm,),
        in_specs=[
            pl.BlockSpec((tm, K1), lambda i: (i, 0)),
            pl.BlockSpec((K1, H), lambda i: (0, 0)),
            pl.BlockSpec((1, H), lambda i: (0, 0)),
            pl.BlockSpec((H, N2), lambda i: (0, 0)),
            pl.BlockSpec((1, N2), lambda i: (0, 0)),
        ],
        out_specs=pl.BlockSpec((tm, N2), lambda i: (i, 0)),
        compiler_params=_compiler_params(_vmem_limit(tm, per_row, resident)),
        cost_estimate=pl.CostEstimate(
            flops=int(2 * mp * K1 * H + 2 * mp * H * N2),
            transcendentals=int(mp * N2),
            bytes_accessed=int(mp * K1 * 2 + K1 * H * 2 + H * N2 * 2 + mp * N2 * 4)),
    )(xp, w1, b1, w2, b2)
    out = out[:M] if mp != M else out
    return out.reshape(M, n_actions, 128)[:, :, :n_atoms]


# ---------------------------------------------------------------------------
# Glue: NHWC im2col + conv wrapper (slicing/reshape only; GEMM is in Pallas)
# ---------------------------------------------------------------------------

def _im2col_nhwc(x, k, stride, pad):
    """x: [B, H, W, C] -> patches [B*OH*OW, k*k*C], feature order (ki, kj, c)."""
    if pad:
        x = jnp.pad(x, ((0, 0), (pad, pad), (pad, pad), (0, 0)))
    B, H, W, C = x.shape
    oh = (H - k) // stride + 1
    ow = (W - k) // stride + 1
    cols = []
    for i in range(k):
        for j in range(k):
            cols.append(x[:, i:i + stride * oh:stride, j:j + stride * ow:stride, :])
    patches = jnp.concatenate(cols, axis=-1)              # [B, oh, ow, k*k*C]
    return patches.reshape(B * oh * ow, k * k * C), oh, ow


def conv2d_relu_nhwc(x, w_mat, b, oc, k, stride, pad):
    """x: [B, H, W, C]; w_mat: [k*k*C, OCpad] bf16; b: [1, OCpad] -> [B, OH, OW, oc]."""
    B = x.shape[0]
    patches, oh, ow = _im2col_nhwc(x, k, stride, pad)
    y = fused_linear(patches, w_mat, b, relu=True)         # [B*oh*ow, OCpad]
    return y.reshape(B, oh, ow, -1)[..., :oc]


# ---------------------------------------------------------------------------
# Parameters: PyTorch-style init, then transform into kernel-friendly layout
# ---------------------------------------------------------------------------

class ModelConfig(NamedTuple):
    output_size: int
    n_atoms: int
    conv_geom: Tuple[Tuple[int, int, int, int], ...]   # (oc, k, stride, pad) per layer


def init_torch_params(key, image_shape, output_size, n_atoms, fc_sizes,
                      channels=(32, 64, 64), kernel_sizes=(8, 4, 3),
                      strides=(4, 2, 1), paddings=(0, 1, 1)):
    """Deterministic PyTorch-default-style uniform init in PyTorch layouts."""
    c, h, w = image_shape
    keys = jax.random.split(key, 2 * len(channels) + 4)
    ki = 0
    conv = []
    in_c, hh, ww = c, h, w
    for oc, k, s, p in zip(channels, kernel_sizes, strides, paddings):
        fan_in = in_c * k * k
        bound = 1.0 / (fan_in ** 0.5)
        Wt = jax.random.uniform(keys[ki], (oc, in_c, k, k), jnp.float32, -bound, bound); ki += 1
        Bt = jax.random.uniform(keys[ki], (oc,), jnp.float32, -bound, bound); ki += 1
        conv.append((Wt, Bt, k, s, p))
        hh = (hh + 2 * p - k) // s + 1
        ww = (ww + 2 * p - k) // s + 1
        in_c = oc
    conv_out_size = in_c * hh * ww

    def linear_init(kw_, kb_, fin, fout):
        bound = 1.0 / (fin ** 0.5)
        return (jax.random.uniform(kw_, (fin, fout), jnp.float32, -bound, bound),
                jax.random.uniform(kb_, (1, fout), jnp.float32, -bound, bound))

    fc1_w, fc1_b = linear_init(keys[ki], keys[ki + 1], conv_out_size, fc_sizes); ki += 2
    fc2_w, fc2_b = linear_init(keys[ki], keys[ki + 1], fc_sizes, output_size * n_atoms); ki += 2
    return {"conv": conv, "fc1_w": fc1_w, "fc1_b": fc1_b,
            "fc2_w": fc2_w, "fc2_b": fc2_b,
            "final_conv": (in_c, hh, ww), "conv_out_size": conv_out_size}


def prepare_params(torch_params, output_size, n_atoms):
    """PyTorch layouts -> Pallas layouts: fold 1/255, NHWC im2col order, pad to 128 lanes, bf16."""
    assert n_atoms <= 128  # TODO(synk): >128 atoms would need multi-block softmax per action.
    conv_mats, geom = [], []
    for idx, (Wt, Bt, k, s, p) in enumerate(torch_params["conv"]):
        scale = (1.0 / 255.0) if idx == 0 else 1.0       # fold input scale into conv1
        OC, Cin, KH, KW = Wt.shape
        w = (Wt * scale).transpose(2, 3, 1, 0).reshape(KH * KW * Cin, OC)  # (ki,kj,c) rows
        Np = _round_up(OC, 128)
        w = jnp.pad(w, ((0, 0), (0, Np - OC))).astype(jnp.bfloat16)
        bb = jnp.pad(Bt, (0, Np - OC)).reshape(1, Np).astype(jnp.float32)
        conv_mats.append((w, bb))
        geom.append((OC, KH, s, p))

    oc_f, oh_f, ow_f = torch_params["final_conv"]
    fc_sizes = torch_params["fc1_w"].shape[1]
    # Permute fc1 rows from PyTorch NCHW-flatten order (c,h,w) to NHWC-flatten order (h,w,c).
    fc1_w = torch_params["fc1_w"].reshape(oc_f, oh_f, ow_f, fc_sizes)
    fc1_w = fc1_w.transpose(1, 2, 0, 3).reshape(oc_f * oh_f * ow_f, fc_sizes)
    N1 = _round_up(fc_sizes, 128)
    fc1_w = jnp.pad(fc1_w, ((0, 0), (0, N1 - fc_sizes))).astype(jnp.bfloat16)
    fc1_b = jnp.pad(torch_params["fc1_b"], ((0, 0), (0, N1 - fc_sizes))).astype(jnp.float32)

    A = output_size
    fc2_w = torch_params["fc2_w"].reshape(fc_sizes, A, n_atoms)
    fc2_w = jnp.pad(fc2_w, ((0, N1 - fc_sizes), (0, 0), (0, 128 - n_atoms)))
    fc2_w = fc2_w.reshape(N1, A * 128).astype(jnp.bfloat16)
    # Padded atom lanes get bias -1e30 (zero weight columns) -> exp underflows to 0
    # in the fused softmax, so no in-kernel mask is needed.
    fc2_b = torch_params["fc2_b"].reshape(A, n_atoms)
    fc2_b = jnp.pad(fc2_b, ((0, 0), (0, 128 - n_atoms)), constant_values=-1e30)
    fc2_b = fc2_b.reshape(1, A * 128).astype(jnp.float32)

    params = {"conv": tuple(conv_mats), "fc1_w": fc1_w, "fc1_b": fc1_b,
              "fc2_w": fc2_w, "fc2_b": fc2_b}
    config = ModelConfig(output_size=A, n_atoms=n_atoms, conv_geom=tuple(geom))
    return params, config


# ---------------------------------------------------------------------------
# Forward pass (mirrors AtariCatDqnModel.forward, non-dueling head)
# ---------------------------------------------------------------------------

@functools.partial(jax.jit, static_argnums=(1,))
def atari_catdqn_forward(params, config, observation, prev_action=None, prev_reward=None):
    """observation: [..., C, H, W] uint8/float -> probs [..., output_size, n_atoms].

    prev_action / prev_reward are accepted and ignored, as in the PyTorch model.
    Leading dims handled like infer_leading_dims/restore_leading_dims for 0/1/2 lead dims.
    """
    lead = observation.ndim - 3
    assert 0 <= lead <= 2, "expected [C,H,W], [B,C,H,W] or [T,B,C,H,W]"
    img_shape = observation.shape[lead:]
    tb = 1
    for d in observation.shape[:lead]:
        tb *= d
    x = observation.reshape((tb,) + img_shape).astype(jnp.bfloat16)
    x = x.transpose(0, 2, 3, 1)                       # NCHW -> NHWC (once)
    for (w_mat, bb), (oc, k, s, p) in zip(params["conv"], config.conv_geom):
        x = conv2d_relu_nhwc(x, w_mat, bb, oc, k, s, p)
    flat = x.reshape(tb, -1)                          # NHWC flatten (matches fc1 row perm)
    probs = fc_head(flat, params["fc1_w"], params["fc1_b"],
                    params["fc2_w"], params["fc2_b"],
                    n_actions=config.output_size, n_atoms=config.n_atoms)
    return probs.reshape(observation.shape[:lead] + (config.output_size, config.n_atoms))


# ---------------------------------------------------------------------------

if __name__ == "__main__":
    key = jax.random.PRNGKey(0)
    B, C, H, W = 2, 4, 16, 16          # small Atari-like frame stack
    output_size, n_atoms, fc_sizes = 6, 51, 128

    kp, ko = jax.random.split(key)
    torch_params = init_torch_params(kp, (C, H, W), output_size, n_atoms, fc_sizes)
    params, config = prepare_params(torch_params, output_size, n_atoms)

    obs = jax.random.randint(ko, (B, C, H, W), 0, 256, dtype=jnp.int32).astype(jnp.uint8)
    prev_action = jnp.zeros((B,), jnp.int32)
    prev_reward = jnp.zeros((B,), jnp.float32)

    out = atari_catdqn_forward(params, config, obs, prev_action, prev_reward)
    out = jax.block_until_ready(out)

    assert out.shape == (B, output_size, n_atoms), out.shape
    # Each action's atom distribution must sum to ~1 (softmax uses an exact divide).
    sums = jnp.sum(out.astype(jnp.float32), axis=-1)
    assert bool(jnp.all(jnp.abs(sums - 1.0) < 1e-3)), sums
    assert bool(jnp.all(out >= 0.0))
    print("KERNEL_OK")
</pallas_src>

<mosaic_0001>
module attributes {stable_mosaic.version = 11 : i64} {
  func.func @_gemm_bias_act_kernel(%arg0: i32, %arg1: memref<8x256xbf16, #tpu.memory_space<vmem>>, %arg2: memref<256x128xbf16, #tpu.memory_space<vmem>>, %arg3: memref<1x128xf32, #tpu.memory_space<vmem>>, %arg4: memref<8x128xbf16, #tpu.memory_space<vmem>>) attributes {dimension_semantics = [#tpu.dimension_semantics<parallel>], iteration_bounds = array<i64: 3>, scalar_prefetch = 0 : i64, scratch_operands = 0 : i64, tpu.core_type = #tpu.core_type<tc>, window_params = [{transform_indices = @transform_0, window_bounds = array<i64: 8, 256>}, {pipeline_mode = #tpu.pipeline_mode<synchronous>, transform_indices = @transform_1, window_bounds = array<i64: 256, 128>}, {pipeline_mode = #tpu.pipeline_mode<synchronous>, transform_indices = @transform_2, window_bounds = array<i64: 1, 128>}, {transform_indices = @transform_3, window_bounds = array<i64: 8, 128>}]} {
    %c0 = arith.constant 0 : index
    %c0_0 = arith.constant 0 : index
    %0 = vector.load %arg1[%c0, %c0_0] : memref<8x256xbf16, #tpu.memory_space<vmem>>, vector<8x256xbf16>
    %c0_1 = arith.constant 0 : index
    %c0_2 = arith.constant 0 : index
    %1 = vector.load %arg2[%c0_1, %c0_2] : memref<256x128xbf16, #tpu.memory_space<vmem>>, vector<256x128xbf16>
    %cst = arith.constant dense<0.000000e+00> : vector<8x128xf32>
    %2 = tpu.matmul %0, %1, %cst {dimension_numbers = #tpu.dot_dimension_numbers<[1], [0], [0], [1], [0, 0, 1, 1], [], []>} : vector<8x256xbf16>, vector<256x128xbf16>, vector<8x128xf32> -> vector<8x128xf32>
    %c0_3 = arith.constant 0 : index
    %c0_4 = arith.constant 0 : index
    %3 = vector.load %arg3[%c0_3, %c0_4] : memref<1x128xf32, #tpu.memory_space<vmem>>, vector<1x128xf32>
    %4 = vector.broadcast %3 : vector<1x128xf32> to vector<8x128xf32>
    %5 = arith.addf %2, %4 : vector<8x128xf32>
    %cst_5 = arith.constant 0.000000e+00 : f32
    %6 = vector.broadcast %cst_5 : f32 to vector<8x128xf32>
    %7 = arith.maximumf %5, %6 : vector<8x128xf32>
    %8 = arith.truncf %7 : vector<8x128xf32> to vector<8x128xbf16>
    %c0_6 = arith.constant 0 : index
    %c0_7 = arith.constant 0 : index
    %9 = vector.load %arg4[%c0_6, %c0_7] : memref<8x128xbf16, #tpu.memory_space<vmem>>, vector<8x128xbf16>
    tpu.vector_store %arg4[%c0_6, %c0_7], %8 {strides = array<i32>} : memref<8x128xbf16, #tpu.memory_space<vmem>>, vector<8x128xbf16>,
    return
  }
  func.func @transform_0(%arg0: i32) -> (i32, i32) {
    %c0_i32 = arith.constant 0 : i32
    %c0_i32_0 = arith.constant 0 : i32
    return %arg0, %c0_i32 : i32, i32
  }
  func.func @transform_1(%arg0: i32) -> (i32, i32) {
    %c0_i32 = arith.constant 0 : i32
    %c0_i32_0 = arith.constant 0 : i32
    %c0_i32_1 = arith.constant 0 : i32
    return %c0_i32, %c0_i32_0 : i32, i32
  }
  func.func @transform_2(%arg0: i32) -> (i32, i32) {
    %c0_i32 = arith.constant 0 : i32
    %c0_i32_0 = arith.constant 0 : i32
    %c0_i32_1 = arith.constant 0 : i32
    return %c0_i32, %c0_i32_0 : i32, i32
  }
  func.func @transform_3(%arg0: i32) -> (i32, i32) {
    %c0_i32 = arith.constant 0 : i32
    %c0_i32_0 = arith.constant 0 : i32
    return %arg0, %c0_i32 : i32, i32
  }
}

module attributes {stable_mosaic.version = 11 : i64} {
  func.func @_gemm_bias_act_kernel(%arg0: i32, %arg1: memref<8x512xbf16, #tpu.memory_space<vmem>>, %arg2: memref<512x128xbf16, #tpu.memory_space<vmem>>, %arg3: memref<1x128xf32, #tpu.memory_space<vmem>>, %arg4: memref<8x128xbf16, #tpu.memory_space<vmem>>) attributes {dimension_semantics = [#tpu.dimension_semantics<parallel>], iteration_bounds = array<i64: 1>, scalar_prefetch = 0 : i64, scratch_operands = 0 : i64, tpu.core_type = #tpu.core_type<tc>, window_params = [{transform_indices = @transform_0, window_bounds = array<i64: 8, 512>}, {pipeline_mode = #tpu.pipeline_mode<synchronous>, transform_indices = @transform_1, window_bounds = array<i64: 512, 128>}, {pipeline_mode = #tpu.pipeline_mode<synchronous>, transform_indices = @transform_2, window_bounds = array<i64: 1, 128>}, {transform_indices = @transform_3, window_bounds = array<i64: 8, 128>}]} {
    %c0 = arith.constant 0 : index
    %c0_0 = arith.constant 0 : index
    %0 = vector.load %arg1[%c0, %c0_0] : memref<8x512xbf16, #tpu.memory_space<vmem>>, vector<8x512xbf16>
    %c0_1 = arith.constant 0 : index
    %c0_2 = arith.constant 0 : index
    %1 = vector.load %arg2[%c0_1, %c0_2] : memref<512x128xbf16, #tpu.memory_space<vmem>>, vector<512x128xbf16>
    %cst = arith.constant dense<0.000000e+00> : vector<8x128xf32>
    %2 = tpu.matmul %0, %1, %cst {dimension_numbers = #tpu.dot_dimension_numbers<[1], [0], [0], [1], [0, 0, 1, 1], [], []>} : vector<8x512xbf16>, vector<512x128xbf16>, vector<8x128xf32> -> vector<8x128xf32>
    %c0_3 = arith.constant 0 : index
    %c0_4 = arith.constant 0 : index
    %3 = vector.load %arg3[%c0_3, %c0_4] : memref<1x128xf32, #tpu.memory_space<vmem>>, vector<1x128xf32>
    %4 = vector.broadcast %3 : vector<1x128xf32> to vector<8x128xf32>
    %5 = arith.addf %2, %4 : vector<8x128xf32>
    %cst_5 = arith.constant 0.000000e+00 : f32
    %6 = vector.broadcast %cst_5 : f32 to vector<8x128xf32>
    %7 = arith.maximumf %5, %6 : vector<8x128xf32>
    %8 = arith.truncf %7 : vector<8x128xf32> to vector<8x128xbf16>
    %c0_6 = arith.constant 0 : index
    %c0_7 = arith.constant 0 : index
    %9 = vector.load %arg4[%c0_6, %c0_7] : memref<8x128xbf16, #tpu.memory_space<vmem>>, vector<8x128xbf16>
    tpu.vector_store %arg4[%c0_6, %c0_7], %8 {strides = array<i32>} : memref<8x128xbf16, #tpu.memory_space<vmem>>, vector<8x128xbf16>,
    return
  }
  func.func @transform_0(%arg0: i32) -> (i32, i32) {
    %c0_i32 = arith.constant 0 : i32
    %c0_i32_0 = arith.constant 0 : i32
    return %arg0, %c0_i32 : i32, i32
  }
  func.func @transform_1(%arg0: i32) -> (i32, i32) {
    %c0_i32 = arith.constant 0 : i32
    %c0_i32_0 = arith.constant 0 : i32
    %c0_i32_1 = arith.constant 0 : i32
    return %c0_i32, %c0_i32_0 : i32, i32
  }
  func.func @transform_2(%arg0: i32) -> (i32, i32) {
    %c0_i32 = arith.constant 0 : i32
    %c0_i32_0 = arith.constant 0 : i32
    %c0_i32_1 = arith.constant 0 : i32
    return %c0_i32, %c0_i32_0 : i32, i32
  }
  func.func @transform_3(%arg0: i32) -> (i32, i32) {
    %c0_i32 = arith.constant 0 : i32
    %c0_i32_0 = arith.constant 0 : i32
    return %arg0, %c0_i32 : i32, i32
  }
}

module attributes {stable_mosaic.version = 11 : i64} {
  func.func @_gemm_bias_act_kernel(%arg0: i32, %arg1: memref<8x576xbf16, #tpu.memory_space<vmem>>, %arg2: memref<576x128xbf16, #tpu.memory_space<vmem>>, %arg3: memref<1x128xf32, #tpu.memory_space<vmem>>, %arg4: memref<8x128xbf16, #tpu.memory_space<vmem>>) attributes {dimension_semantics = [#tpu.dimension_semantics<parallel>], iteration_bounds = array<i64: 1>, scalar_prefetch = 0 : i64, scratch_operands = 0 : i64, tpu.core_type = #tpu.core_type<tc>, window_params = [{transform_indices = @transform_0, window_bounds = array<i64: 8, 576>}, {pipeline_mode = #tpu.pipeline_mode<synchronous>, transform_indices = @transform_1, window_bounds = array<i64: 576, 128>}, {pipeline_mode = #tpu.pipeline_mode<synchronous>, transform_indices = @transform_2, window_bounds = array<i64: 1, 128>}, {transform_indices = @transform_3, window_bounds = array<i64: 8, 128>}]} {
    %c0 = arith.constant 0 : index
    %c0_0 = arith.constant 0 : index
    %0 = vector.load %arg1[%c0, %c0_0] : memref<8x576xbf16, #tpu.memory_space<vmem>>, vector<8x576xbf16>
    %c0_1 = arith.constant 0 : index
    %c0_2 = arith.constant 0 : index
    %1 = vector.load %arg2[%c0_1, %c0_2] : memref<576x128xbf16, #tpu.memory_space<vmem>>, vector<576x128xbf16>
    %cst = arith.constant dense<0.000000e+00> : vector<8x128xf32>
    %2 = tpu.matmul %0, %1, %cst {dimension_numbers = #tpu.dot_dimension_numbers<[1], [0], [0], [1], [0, 0, 1, 1], [], []>} : vector<8x576xbf16>, vector<576x128xbf16>, vector<8x128xf32> -> vector<8x128xf32>
    %c0_3 = arith.constant 0 : index
    %c0_4 = arith.constant 0 : index
    %3 = vector.load %arg3[%c0_3, %c0_4] : memref<1x128xf32, #tpu.memory_space<vmem>>, vector<1x128xf32>
    %4 = vector.broadcast %3 : vector<1x128xf32> to vector<8x128xf32>
    %5 = arith.addf %2, %4 : vector<8x128xf32>
    %cst_5 = arith.constant 0.000000e+00 : f32
    %6 = vector.broadcast %cst_5 : f32 to vector<8x128xf32>
    %7 = arith.maximumf %5, %6 : vector<8x128xf32>
    %8 = arith.truncf %7 : vector<8x128xf32> to vector<8x128xbf16>
    %c0_6 = arith.constant 0 : index
    %c0_7 = arith.constant 0 : index
    %9 = vector.load %arg4[%c0_6, %c0_7] : memref<8x128xbf16, #tpu.memory_space<vmem>>, vector<8x128xbf16>
    tpu.vector_store %arg4[%c0_6, %c0_7], %8 {strides = array<i32>} : memref<8x128xbf16, #tpu.memory_space<vmem>>, vector<8x128xbf16>,
    return
  }
  func.func @transform_0(%arg0: i32) -> (i32, i32) {
    %c0_i32 = arith.constant 0 : i32
    %c0_i32_0 = arith.constant 0 : i32
    return %arg0, %c0_i32 : i32, i32
  }
  func.func @transform_1(%arg0: i32) -> (i32, i32) {
    %c0_i32 = arith.constant 0 : i32
    %c0_i32_0 = arith.constant 0 : i32
    %c0_i32_1 = arith.constant 0 : i32
    return %c0_i32, %c0_i32_0 : i32, i32
  }
  func.func @transform_2(%arg0: i32) -> (i32, i32) {
    %c0_i32 = arith.constant 0 : i32
    %c0_i32_0 = arith.constant 0 : i32
    %c0_i32_1 = arith.constant 0 : i32
    return %c0_i32, %c0_i32_0 : i32, i32
  }
  func.func @transform_3(%arg0: i32) -> (i32, i32) {
    %c0_i32 = arith.constant 0 : i32
    %c0_i32_0 = arith.constant 0 : i32
    return %arg0, %c0_i32 : i32, i32
  }
}

module attributes {stable_mosaic.version = 11 : i64} {
  func.func @_fc_head_kernel(%arg0: i32, %arg1: memref<8x64xbf16, #tpu.memory_space<vmem>>, %arg2: memref<64x128xbf16, #tpu.memory_space<vmem>>, %arg3: memref<1x128xf32, #tpu.memory_space<vmem>>, %arg4: memref<128x768xbf16, #tpu.memory_space<vmem>>, %arg5: memref<1x768xf32, #tpu.memory_space<vmem>>, %arg6: memref<8x768xf32, #tpu.memory_space<vmem>>) attributes {dimension_semantics = [#tpu.dimension_semantics<parallel>], iteration_bounds = array<i64: 1>, scalar_prefetch = 0 : i64, scratch_operands = 0 : i64, tpu.core_type = #tpu.core_type<tc>, window_params = [{transform_indices = @transform_0, window_bounds = array<i64: 8, 64>}, {pipeline_mode = #tpu.pipeline_mode<synchronous>, transform_indices = @transform_1, window_bounds = array<i64: 64, 128>}, {pipeline_mode = #tpu.pipeline_mode<synchronous>, transform_indices = @transform_2, window_bounds = array<i64: 1, 128>}, {pipeline_mode = #tpu.pipeline_mode<synchronous>, transform_indices = @transform_3, window_bounds = array<i64: 128, 768>}, {pipeline_mode = #tpu.pipeline_mode<synchronous>, transform_indices = @transform_4, window_bounds = array<i64: 1, 768>}, {transform_indices = @transform_5, window_bounds = array<i64: 8, 768>}]} {
    %c0 = arith.constant 0 : index
    %c0_0 = arith.constant 0 : index
    %0 = vector.load %arg1[%c0, %c0_0] : memref<8x64xbf16, #tpu.memory_space<vmem>>, vector<8x64xbf16>
    %c0_1 = arith.constant 0 : index
    %c0_2 = arith.constant 0 : index
    %1 = vector.load %arg2[%c0_1, %c0_2] : memref<64x128xbf16, #tpu.memory_space<vmem>>, vector<64x128xbf16>
    %cst = arith.constant dense<0.000000e+00> : vector<8x128xf32>
    %2 = tpu.matmul %0, %1, %cst {dimension_numbers = #tpu.dot_dimension_numbers<[1], [0], [0], [1], [0, 0, 1, 1], [], []>} : vector<8x64xbf16>, vector<64x128xbf16>, vector<8x128xf32> -> vector<8x128xf32>
    %c0_3 = arith.constant 0 : index
    %c0_4 = arith.constant 0 : index
    %3 = vector.load %arg3[%c0_3, %c0_4] : memref<1x128xf32, #tpu.memory_space<vmem>>, vector<1x128xf32>
    %4 = vector.broadcast %3 : vector<1x128xf32> to vector<8x128xf32>
    %5 = arith.addf %2, %4 : vector<8x128xf32>
    %cst_5 = arith.constant 0.000000e+00 : f32
    %6 = vector.broadcast %cst_5 : f32 to vector<8x128xf32>
    %7 = arith.maximumf %5, %6 : vector<8x128xf32>
    %8 = arith.truncf %7 : vector<8x128xf32> to vector<8x128xbf16>
    %c0_6 = arith.constant 0 : index
    %c0_7 = arith.constant 0 : index
    %9 = vector.load %arg4[%c0_6, %c0_7] : memref<128x768xbf16, #tpu.memory_space<vmem>>, vector<128x768xbf16>
    %cst_8 = arith.constant dense<0.000000e+00> : vector<8x768xf32>
    %10 = tpu.matmul %8, %9, %cst_8 {dimension_numbers = #tpu.dot_dimension_numbers<[1], [0], [0], [1], [0, 0, 1, 1], [], []>} : vector<8x128xbf16>, vector<128x768xbf16>, vector<8x768xf32> -> vector<8x768xf32>
    %c0_9 = arith.constant 0 : index
    %c0_10 = arith.constant 0 : index
    %11 = vector.load %arg5[%c0_9, %c0_10] : memref<1x768xf32, #tpu.memory_space<vmem>>, vector<1x768xf32>
    %12 = vector.broadcast %11 : vector<1x768xf32> to vector<8x768xf32>
    %13 = arith.addf %10, %12 : vector<8x768xf32>
    %14 = vector.extract_strided_slice %13 {offsets = [0, 0], sizes = [8, 128], strides = [1, 1]} : vector<8x768xf32> to vector<8x128xf32>
    %cst_11 = arith.constant dense<0xFF800000> : vector<8xf32>
    %15 = vector.multi_reduction <maximumf>, %14, %cst_11 [1] : vector<8x128xf32> to vector<8xf32>
    %16 = vector.shape_cast %15 : vector<8xf32> to vector<8x1xf32>
    %17 = vector.broadcast %16 : vector<8x1xf32> to vector<8x128xf32>
    %18 = arith.subf %14, %17 : vector<8x128xf32>
    %19 = math.exp %18 : vector<8x128xf32>
    %cst_12 = arith.constant dense<0.000000e+00> : vector<8xf32>
    %20 = vector.multi_reduction <add>, %19, %cst_12 [1] : vector<8x128xf32> to vector<8xf32>
    %21 = vector.shape_cast %20 : vector<8xf32> to vector<8x1xf32>
    %22 = vector.broadcast %21 : vector<8x1xf32> to vector<8x128xf32>
    %23 = arith.divf %19, %22 : vector<8x128xf32>
    %c0_13 = arith.constant 0 : index
    %c0_14 = arith.constant 0 : index
    %24 = vector.load %arg6[%c0_13, %c0_14] : memref<8x768xf32, #tpu.memory_space<vmem>>, vector<8x128xf32>
    tpu.vector_store %arg6[%c0_13, %c0_14], %23 {strides = array<i32>} : memref<8x768xf32, #tpu.memory_space<vmem>>, vector<8x128xf32>,
    %25 = vector.extract_strided_slice %13 {offsets = [0, 128], sizes = [8, 128], strides = [1, 1]} : vector<8x768xf32> to vector<8x128xf32>
    %cst_15 = arith.constant dense<0xFF800000> : vector<8xf32>
    %26 = vector.multi_reduction <maximumf>, %25, %cst_15 [1] : vector<8x128xf32> to vector<8xf32>
    %27 = vector.shape_cast %26 : vector<8xf32> to vector<8x1xf32>
    %28 = vector.broadcast %27 : vector<8x1xf32> to vector<8x128xf32>
    %29 = arith.subf %25, %28 : vector<8x128xf32>
    %30 = math.exp %29 : vector<8x128xf32>
    %cst_16 = arith.constant dense<0.000000e+00> : vector<8xf32>
    %31 = vector.multi_reduction <add>, %30, %cst_16 [1] : vector<8x128xf32> to vector<8xf32>
    %32 = vector.shape_cast %31 : vector<8xf32> to vector<8x1xf32>
    %33 = vector.broadcast %32 : vector<8x1xf32> to vector<8x128xf32>
    %34 = arith.divf %30, %33 : vector<8x128xf32>
    %c0_17 = arith.constant 0 : index
    %c128 = arith.constant 128 : index
    %35 = vector.load %arg6[%c0_17, %c128] : memref<8x768xf32, #tpu.memory_space<vmem>>, vector<8x128xf32>
    tpu.vector_store %arg6[%c0_17, %c128], %34 {strides = array<i32>} : memref<8x768xf32, #tpu.memory_space<vmem>>, vector<8x128xf32>,
    %36 = vector.extract_strided_slice %13 {offsets = [0, 256], sizes = [8, 128], strides = [1, 1]} : vector<8x768xf32> to vector<8x128xf32>
    %cst_18 = arith.constant dense<0xFF800000> : vector<8xf32>
    %37 = vector.multi_reduction <maximumf>, %36, %cst_18 [1] : vector<8x128xf32> to vector<8xf32>
    %38 = vector.shape_cast %37 : vector<8xf32> to vector<8x1xf32>
    %39 = vector.broadcast %38 : vector<8x1xf32> to vector<8x128xf32>
    %40 = arith.subf %36, %39 : vector<8x128xf32>
    %41 = math.exp %40 : vector<8x128xf32>
    %cst_19 = arith.constant dense<0.000000e+00> : vector<8xf32>
    %42 = vector.multi_reduction <add>, %41, %cst_19 [1] : vector<8x128xf32> to vector<8xf32>
    %43 = vector.shape_cast %42 : vector<8xf32> to vector<8x1xf32>
    %44 = vector.broadcast %43 : vector<8x1xf32> to vector<8x128xf32>
    %45 = arith.divf %41, %44 : vector<8x128xf32>
    %c0_20 = arith.constant 0 : index
    %c256 = arith.constant 256 : index
    %46 = vector.load %arg6[%c0_20, %c256] : memref<8x768xf32, #tpu.memory_space<vmem>>, vector<8x128xf32>
    tpu.vector_store %arg6[%c0_20, %c256], %45 {strides = array<i32>} : memref<8x768xf32, #tpu.memory_space<vmem>>, vector<8x128xf32>,
    %47 = vector.extract_strided_slice %13 {offsets = [0, 384], sizes = [8, 128], strides = [1, 1]} : vector<8x768xf32> to vector<8x128xf32>
    %cst_21 = arith.constant dense<0xFF800000> : vector<8xf32>
    %48 = vector.multi_reduction <maximumf>, %47, %cst_21 [1] : vector<8x128xf32> to vector<8xf32>
    %49 = vector.shape_cast %48 : vector<8xf32> to vector<8x1xf32>
    %50 = vector.broadcast %49 : vector<8x1xf32> to vector<8x128xf32>
    %51 = arith.subf %47, %50 : vector<8x128xf32>
    %52 = math.exp %51 : vector<8x128xf32>
    %cst_22 = arith.constant dense<0.000000e+00> : vector<8xf32>
    %53 = vector.multi_reduction <add>, %52, %cst_22 [1] : vector<8x128xf32> to vector<8xf32>
    %54 = vector.shape_cast %53 : vector<8xf32> to vector<8x1xf32>
    %55 = vector.broadcast %54 : vector<8x1xf32> to vector<8x128xf32>
    %56 = arith.divf %52, %55 : vector<8x128xf32>
    %c0_23 = arith.constant 0 : index
    %c384 = arith.constant 384 : index
    %57 = vector.load %arg6[%c0_23, %c384] : memref<8x768xf32, #tpu.memory_space<vmem>>, vector<8x128xf32>
    tpu.vector_store %arg6[%c0_23, %c384], %56 {strides = array<i32>} : memref<8x768xf32, #tpu.memory_space<vmem>>, vector<8x128xf32>,
    %58 = vector.extract_strided_slice %13 {offsets = [0, 512], sizes = [8, 128], strides = [1, 1]} : vector<8x768xf32> to vector<8x128xf32>
    %cst_24 = arith.constant dense<0xFF800000> : vector<8xf32>
    %59 = vector.multi_reduction <maximumf>, %58, %cst_24 [1] : vector<8x128xf32> to vector<8xf32>
    %60 = vector.shape_cast %59 : vector<8xf32> to vector<8x1xf32>
    %61 = vector.broadcast %60 : vector<8x1xf32> to vector<8x128xf32>
    %62 = arith.subf %58, %61 : vector<8x128xf32>
    %63 = math.exp %62 : vector<8x128xf32>
    %cst_25 = arith.constant dense<0.000000e+00> : vector<8xf32>
    %64 = vector.multi_reduction <add>, %63, %cst_25 [1] : vector<8x128xf32> to vector<8xf32>
    %65 = vector.shape_cast %64 : vector<8xf32> to vector<8x1xf32>
    %66 = vector.broadcast %65 : vector<8x1xf32> to vector<8x128xf32>
    %67 = arith.divf %63, %66 : vector<8x128xf32>
    %c0_26 = arith.constant 0 : index
    %c512 = arith.constant 512 : index
    %68 = vector.load %arg6[%c0_26, %c512] : memref<8x768xf32, #tpu.memory_space<vmem>>, vector<8x128xf32>
    tpu.vector_store %arg6[%c0_26, %c512], %67 {strides = array<i32>} : memref<8x768xf32, #tpu.memory_space<vmem>>, vector<8x128xf32>,
    %69 = vector.extract_strided_slice %13 {offsets = [0, 640], sizes = [8, 128], strides = [1, 1]} : vector<8x768xf32> to vector<8x128xf32>
    %cst_27 = arith.constant dense<0xFF800000> : vector<8xf32>
    %70 = vector.multi_reduction <maximumf>, %69, %cst_27 [1] : vector<8x128xf32> to vector<8xf32>
    %71 = vector.shape_cast %70 : vector<8xf32> to vector<8x1xf32>
    %72 = vector.broadcast %71 : vector<8x1xf32> to vector<8x128xf32>
    %73 = arith.subf %69, %72 : vector<8x128xf32>
    %74 = math.exp %73 : vector<8x128xf32>
    %cst_28 = arith.constant dense<0.000000e+00> : vector<8xf32>
    %75 = vector.multi_reduction <add>, %74, %cst_28 [1] : vector<8x128xf32> to vector<8xf32>
    %76 = vector.shape_cast %75 : vector<8xf32> to vector<8x1xf32>
    %77 = vector.broadcast %76 : vector<8x1xf32> to vector<8x128xf32>
    %78 = arith.divf %74, %77 : vector<8x128xf32>
    %c0_29 = arith.constant 0 : index
    %c640 = arith.constant 640 : index
    %79 = vector.load %arg6[%c0_29, %c640] : memref<8x768xf32, #tpu.memory_space<vmem>>, vector<8x128xf32>
    tpu.vector_store %arg6[%c0_29, %c640], %78 {strides = array<i32>} : memref<8x768xf32, #tpu.memory_space<vmem>>, vector<8x128xf32>,
    return
  }
  func.func @transform_0(%arg0: i32) -> (i32, i32) {
    %c0_i32 = arith.constant 0 : i32
    %c0_i32_0 = arith.constant 0 : i32
    return %arg0, %c0_i32 : i32, i32
  }
  func.func @transform_1(%arg0: i32) -> (i32, i32) {
    %c0_i32 = arith.constant 0 : i32
    %c0_i32_0 = arith.constant 0 : i32
    %c0_i32_1 = arith.constant 0 : i32
    return %c0_i32, %c0_i32_0 : i32, i32
  }
  func.func @transform_2(%arg0: i32) -> (i32, i32) {
    %c0_i32 = arith.constant 0 : i32
    %c0_i32_0 = arith.constant 0 : i32
    %c0_i32_1 = arith.constant 0 : i32
    return %c0_i32, %c0_i32_0 : i32, i32
  }
  func.func @transform_3(%arg0: i32) -> (i32, i32) {
    %c0_i32 = arith.constant 0 : i32
    %c0_i32_0 = arith.constant 0 : i32
    %c0_i32_1 = arith.constant 0 : i32
    return %c0_i32, %c0_i32_0 : i32, i32
  }
  func.func @transform_4(%arg0: i32) -> (i32, i32) {
    %c0_i32 = arith.constant 0 : i32
    %c0_i32_0 = arith.constant 0 : i32
    %c0_i32_1 = arith.constant 0 : i32
    return %c0_i32, %c0_i32_0 : i32, i32
  }
  func.func @transform_5(%arg0: i32) -> (i32, i32) {
    %c0_i32 = arith.constant 0 : i32
    %c0_i32_0 = arith.constant 0 : i32
    return %arg0, %c0_i32 : i32, i32
  }
}

</mosaic_0001>

<llo_original>
// kernel: atari_catdqn_forward.4
$region0: #{atari_catdqn_forward.4}
  #allocation0 [shape = 'u32[]', space=smem, size = 0x4, offset = 0x4, fixed_abs, tag = 'smem constant byte address 0x4 - core index']
  #allocation1 [shape = 'u32[144,128]{1,0:T(1,128)}', space=vmem, size = 0x12000, scoped, tag = 'internal scratch']
  %s0 = inlined_call_operand.vmem [shape: bf16[24,256], index: 0, kind: input, shape index: {}]
  %s1 = inlined_call_operand.vmem [shape: bf16[256,128], index: 1, kind: input, shape index: {}]
  %s2 = inlined_call_operand.vmem [shape: f32[1,128], index: 2, kind: input, shape index: {}]
  %s3 = inlined_call_operand.vmem [shape: bf16[24,128], index: 3, kind: output, shape index: {}]
  %s4 = sld [smem:[#allocation0]]
  $region45: #{atari_catdqn_forward.4} parent=0
    _
  %s6 = ssub.s32 1, %s4
  %s7 = scalar_select 0, %s6, %s4
  loop: start=0, step=1, limit=5
  $region2: #{atari_catdqn_forward.4} parent=0 // loop_pre_header
    _
  $region3: #{atari_catdqn_forward.4} parent=0 // loop_header
    %s9 = sphi 0, %s13
    %p10 = scmp.ge.s32.totalorder %s9, 5
    %s19 = sphi 0, %s21
    %s22 = sphi 0, %s19
    %s23 = sphi 0, %s22
    %s39 = sphi 0, %s23
    %s43 = sphi 0, %s43
    %s45 = sphi 0, %s43
    %s46 = sphi 0, %s45
    %s60 = sphi 0, %s46
    %s64 = sphi 0, %s64
    %s66 = sphi 0, %s64
    %s67 = sphi 0, %s66
    %s81 = sphi 0, %s67
    %s87 = sphi 0, %s89
    %s90 = sphi 0, %s87
    %s91 = sphi 0, %s90
    %s107 = sphi 0, %s91
  $region4: #{atari_catdqn_forward.4} parent=0 // loop_header_branch
    %12 = sbr.rel (%p10) target = $region8
  $region5: #{atari_catdqn_forward.4} parent=0 // loop_body
    %s14 = ssub.s32 %s9, 1
    %s15 = ssub.s32 %s9, 2
    %s16 = sadd.s32 %s9, 1
    %s17 = ssub.s32 %s9, %s16
    %p18 = scmp.eq.s32.totalorder %s17, 0
    %s20 = sadd.s32 %s19, 1
    %s21 = scalar_select %p18, %s19, %s20
    %p24 = pneg %p18
    %p25 = scmp.eq.s32.totalorder %s9, 2
    %p26 = por %p24, %p25
    %p27 = scmp.ne.s32.totalorder %s19, %s22
    %p28 = scmp.eq.s32.totalorder %s9, 0
    %p29 = por %p27, %p28
    %p30 = scmp.ne.s32.totalorder %s19, %s22
    %p31 = scmp.eq.s32.totalorder %s14, 2
    %p32 = por %p30, %p31
    %p33 = scmp.ne.s32.totalorder %s22, %s23
    %p34 = scmp.eq.s32.totalorder %s14, 0
    %p35 = por %p33, %p34
    %p36 = scmp.ne.s32.totalorder %s22, %s23
    %p37 = scmp.eq.s32.totalorder %s15, 2
    %p38 = por %p36, %p37
    %p40 = scmp.ne.s32.totalorder %s23, %s39
    %p41 = scmp.eq.s32.totalorder %s15, 0
    %p42 = por %p40, %p41
    %s44 = sadd.s32 %s43, 1
    %p47 = scmp.eq.s32.totalorder %s9, 2
    %p48 = scmp.ne.s32.totalorder %s43, %s45
    %p49 = scmp.eq.s32.totalorder %s9, 0
    %p50 = por %p48, %p49
    %p51 = scmp.ne.s32.totalorder %s43, %s45
    %p52 = scmp.eq.s32.totalorder %s14, 2
    %p53 = por %p51, %p52
    %p54 = scmp.ne.s32.totalorder %s45, %s46
    %p55 = scmp.eq.s32.totalorder %s14, 0
    %p56 = por %p54, %p55
    %p57 = scmp.ne.s32.totalorder %s45, %s46
    %p58 = scmp.eq.s32.totalorder %s15, 2
    %p59 = por %p57, %p58
    %p61 = scmp.ne.s32.totalorder %s46, %s60
    %p62 = scmp.eq.s32.totalorder %s15, 0
    %p63 = por %p61, %p62
    %s65 = sadd.s32 %s64, 1
    %p68 = scmp.eq.s32.totalorder %s9, 2
    %p69 = scmp.ne.s32.totalorder %s64, %s66
    %p70 = scmp.eq.s32.totalorder %s9, 0
    %p71 = por %p69, %p70
    %p72 = scmp.ne.s32.totalorder %s64, %s66
    %p73 = scmp.eq.s32.totalorder %s14, 2
    %p74 = por %p72, %p73
    %p75 = scmp.ne.s32.totalorder %s66, %s67
    %p76 = scmp.eq.s32.totalorder %s14, 0
    %p77 = por %p75, %p76
    %p78 = scmp.ne.s32.totalorder %s66, %s67
    %p79 = scmp.eq.s32.totalorder %s15, 2
    %p80 = por %p78, %p79
    %p82 = scmp.ne.s32.totalorder %s67, %s81
    %p83 = scmp.eq.s32.totalorder %s15, 0
    %p84 = por %p82, %p83
    %s85 = ssub.s32 %s9, %s16
    %p86 = scmp.eq.s32.totalorder %s85, 0
    %s88 = sadd.s32 %s87, 1
    %s89 = scalar_select %p86, %s87, %s88
    %p92 = pneg %p86
    %p93 = scmp.eq.s32.totalorder %s9, 2
    %p94 = por %p92, %p93
    %p95 = scmp.ne.s32.totalorder %s87, %s90
    %p96 = scmp.eq.s32.totalorder %s9, 0
    %p97 = por %p95, %p96
    %p98 = scmp.ne.s32.totalorder %s87, %s90
    %p99 = scmp.eq.s32.totalorder %s14, 2
    %p100 = por %p98, %p99
    %p101 = scmp.ne.s32.totalorder %s90, %s91
    %p102 = scmp.eq.s32.totalorder %s14, 0
    %p103 = por %p101, %p102
    %p104 = scmp.ne.s32.totalorder %s90, %s91
    %p105 = scmp.eq.s32.totalorder %s15, 2
    %p106 = por %p104, %p105
    %p108 = scmp.ne.s32.totalorder %s91, %s107
    %p109 = scmp.eq.s32.totalorder %s15, 0
    %p110 = por %p108, %p109
    %p111 = scmp.le.s32.totalorder 1, %s9
    %p112 = scmp.lt.s32.totalorder %s9, 4
    %p113 = pnand %p111, %p112
    %p114 = pneg %p113
    // Predicated region
    $region9: #{atari_catdqn_forward.4} parent=5 // pred_check
      _
    $region10: #{atari_catdqn_forward.4} parent=5 // pred_check_branch
      %116 = sbr.rel (%p113) target = $region12
    $region11: #{atari_catdqn_forward.4} parent=5 // pred_region
      %s117 = ssub.s32 %s9, 1
      // Predicated region
      $region13: #{atari_catdqn_forward.4} parent=11 // pred_check
        %p118 = pneg %p56
      $region14: #{atari_catdqn_forward.4} parent=11 // pred_check_branch
        %120 = sbr.rel (%p118) target = $region16
      $region15: #{atari_catdqn_forward.4} parent=11 // pred_region
        _
      $region16: #{atari_catdqn_forward.4} parent=11 // pred_fallthru
        _
      // Predicated region
      $region17: #{atari_catdqn_forward.4} parent=11 // pred_check
        %p121 = pneg %p77
      $region18: #{atari_catdqn_forward.4} parent=11 // pred_check_branch
        %123 = sbr.rel (%p121) target = $region20
      $region19: #{atari_catdqn_forward.4} parent=11 // pred_region
        _
      $region20: #{atari_catdqn_forward.4} parent=11 // pred_fallthru
        _
    $region12: #{atari_catdqn_forward.4} parent=5 // pred_fallthru
      _
    %p124 = scmp.lt.s32.totalorder %s9, 3
    // Predicated region
    $region21: #{atari_catdqn_forward.4} parent=5 // pred_check
      %p125 = pneg %p124
    $region22: #{atari_catdqn_forward.4} parent=5 // pred_check_branch
      %127 = sbr.rel (%p125) target = $region24
    $region23: #{atari_catdqn_forward.4} parent=5 // pred_region
      // Predicated region
      $region25: #{atari_catdqn_forward.4} parent=23 // pred_check
        %p128 = pneg %p29
      $region26: #{atari_catdqn_forward.4} parent=23 // pred_check_branch
        %130 = sbr.rel (%p128) target = $region28
      $region27: #{atari_catdqn_forward.4} parent=23 // pred_region
        %p131 = scmp.lt.s32.totalorder %s9, 2
        %s132 = scalar_select %p131, %s9, 2
        %s133 = smul.addr %s132, 2
        %s134 = smul.addr %s133, 4
        %s135 = scalar_lea.vmem %s0, %s134
      $region28: #{atari_catdqn_forward.4} parent=23 // pred_fallthru
        _
    $region24: #{atari_catdqn_forward.4} parent=5 // pred_fallthru
      _
    %p136 = scmp.le.s32.totalorder 1, %s9
    %p137 = scmp.lt.s32.totalorder %s9, 4
    %p138 = pnand %p136, %p137
    %p139 = pneg %p138
    // Predicated region
    $region29: #{atari_catdqn_forward.4} parent=5 // pred_check
      _
    $region30: #{atari_catdqn_forward.4} parent=5 // pred_check_branch
      %141 = sbr.rel (%p138) target = $region32
    $region31: #{atari_catdqn_forward.4} parent=5 // pred_region
      %s142 = ssub.s32 %s9, 1
      %p143 = scmp.lt.s32.totalorder %s14, 2
      %s144 = scalar_select %p143, %s14, 2
      %s145 = smul.addr %s144, 2
      %s146 = smul.addr %s145, 4
      %s147 = scalar_lea.vmem %s0, %s146
      %p148 = pneg %p35
      %p149 = pneg %p32
      %p150 = pneg %p56
      %p151 = pneg %p53
      %p152 = pneg %p77
      %p153 = pneg %p74
      %p154 = pneg %p103
      %p155 = pneg %p100
      %p156 = scmp.lt.s32.totalorder %s14, 2
      %s157 = scalar_select %p156, %s14, 2
      %s158 = smul.addr %s157, 4
      %s159 = scalar_lea.vmem %s3, %s158
      %p160 = scmp.lt.s32.totalorder %s14, 2
      %s161 = scalar_select %p160, %s14, 2
      %s162 = smul.addr %s161, 2
      %s163 = smul.addr %s162, 4
      %s164 = scalar_lea.vmem %s0, %s163
      %p165 = scmp.lt.s32.totalorder %s14, 2
      %s166 = scalar_select %p165, %s14, 2
      %s167 = smul.addr %s166, 4
      %s168 = scalar_lea.vmem %s3, %s167
      %v170 = vld [vmem:[%s164] sm:$0xff]
      %v171 = vld [vmem:[%s1] sm:$0xf]
      %v172 = vld [vmem:[%s1 + $0x4] sm:$0xf]
      %v173 = vld [vmem:[%s1 + $0x8] sm:$0xf]
      %v174 = vld [vmem:[%s1 + $0xc] sm:$0xf]
      %v175 = vld [vmem:[%s1 + $0x10] sm:$0xf]
      %v176 = vld [vmem:[%s1 + $0x14] sm:$0xf]
      %v177 = vld [vmem:[%s1 + $0x18] sm:$0xf]
      %v178 = vld [vmem:[%s1 + $0x1c] sm:$0xf]
      %v179 = vld [vmem:[%s1 + $0x20] sm:$0xf]
      %v180 = vld [vmem:[%s1 + $0x24] sm:$0xf]
      %v181 = vld [vmem:[%s1 + $0x28] sm:$0xf]
      %v182 = vld [vmem:[%s1 + $0x2c] sm:$0xf]
      %v183 = vld [vmem:[%s1 + $0x30] sm:$0xf]
      %v184 = vld [vmem:[%s1 + $0x34] sm:$0xf]
      %v185 = vld [vmem:[%s1 + $0x38] sm:$0xf]
      %v186 = vld [vmem:[%s1 + $0x3c] sm:$0xf]
      %v187 = vld [vmem:[%s1 + $0x40] sm:$0xf]
      %v188 = vld [vmem:[%s1 + $0x44] sm:$0xf]
      %v189 = vld [vmem:[%s1 + $0x48] sm:$0xf]
      %v190 = vld [vmem:[%s1 + $0x4c] sm:$0xf]
      %v191 = vld [vmem:[%s1 + $0x50] sm:$0xf]
      %v192 = vld [vmem:[%s1 + $0x54] sm:$0xf]
      %v193 = vld [vmem:[%s1 + $0x58] sm:$0xf]
      %v194 = vld [vmem:[%s1 + $0x5c] sm:$0xf]
      %v195 = vld [vmem:[%s1 + $0x60] sm:$0xf]
      %v196 = vld [vmem:[%s1 + $0x64] sm:$0xf]
      %v197 = vld [vmem:[%s1 + $0x68] sm:$0xf]
      %v198 = vld [vmem:[%s1 + $0x6c] sm:$0xf]
      %v199 = vld [vmem:[%s1 + $0x70] sm:$0xf]
      %v200 = vld [vmem:[%s1 + $0x74] sm:$0xf]
      %v201 = vld [vmem:[%s1 + $0x78] sm:$0xf]
      %v202 = vld [vmem:[%s1 + $0x7c] sm:$0xf]
      %v203 = vld [vmem:[%s2] sm:$0x1]
      %v205 = vlaneseq
      %v206 = vshrl.u32 %v205, 7
      %v207 = vsub.s32 0, %v206
      %v208 = vrot.slane %v203, %v207
      %v211 = vunpack.c.l.b16 %v170
      %v212 = vunpack.c.h.b16 %v170
      %v213 = vpack.c.b16 %v211, %v211
      %v214 = vpack.c.b16 %v212, %v212
      %v249 = vunpack.c.l.b16 %v171
      %v250 = vunpack.c.l.b16 %v172
      %v251 = vunpack.c.l.b16 %v173
      %v252 = vunpack.c.l.b16 %v174
      %v253 = vunpack.c.l.b16 %v175
      %v254 = vunpack.c.l.b16 %v176
      %v255 = vunpack.c.l.b16 %v177
      %v256 = vunpack.c.l.b16 %v178
      %v257 = vunpack.c.l.b16 %v179
      %v258 = vunpack.c.l.b16 %v180
      %v259 = vunpack.c.l.b16 %v181
      %v260 = vunpack.c.l.b16 %v182
      %v261 = vunpack.c.l.b16 %v183
      %v262 = vunpack.c.l.b16 %v184
      %v263 = vunpack.c.l.b16 %v185
      %v264 = vunpack.c.l.b16 %v186
      %v265 = vunpack.c.l.b16 %v187
      %v266 = vunpack.c.l.b16 %v188
      %v267 = vunpack.c.l.b16 %v189
      %v268 = vunpack.c.l.b16 %v190
      %v269 = vunpack.c.l.b16 %v191
      %v270 = vunpack.c.l.b16 %v192
      %v271 = vunpack.c.l.b16 %v193
      %v272 = vunpack.c.l.b16 %v194
      %v273 = vunpack.c.l.b16 %v195
      %v274 = vunpack.c.l.b16 %v196
      %v275 = vunpack.c.l.b16 %v197
      %v276 = vunpack.c.l.b16 %v198
      %v277 = vunpack.c.l.b16 %v199
      %v278 = vunpack.c.l.b16 %v200
      %v279 = vunpack.c.l.b16 %v201
      %v280 = vunpack.c.l.b16 %v202
      %v281 = vpack.c.b16 %v250, %v249
      %v282 = vpack.c.b16 %v252, %v251
      %v283 = vpack.c.b16 %v254, %v253
      %v284 = vpack.c.b16 %v256, %v255
      %v285 = vpack.c.b16 %v258, %v257
      %v286 = vpack.c.b16 %v260, %v259
      %v287 = vpack.c.b16 %v262, %v261
      %v288 = vpack.c.b16 %v264, %v263
      %v289 = vpack.c.b16 %v266, %v265
      %v290 = vpack.c.b16 %v268, %v267
      %v291 = vpack.c.b16 %v270, %v269
      %v292 = vpack.c.b16 %v272, %v271
      %v293 = vpack.c.b16 %v274, %v273
      %v294 = vpack.c.b16 %v276, %v275
      %v295 = vpack.c.b16 %v278, %v277
      %v296 = vpack.c.b16 %v280, %v279
      %313 = vmatprep.subr.bf16.mxu0 0
      %314 = vmatpush1.bf16.msra.mxu0 %v281
      %315 = vmatprep.subr.bf16.mxu0 0
      %316 = vmatpush1.bf16.msra.mxu0 %v282
      %317 = vmatprep.subr.bf16.mxu0 0
      %318 = vmatpush1.bf16.msra.mxu0 %v283
      %319 = vmatprep.subr.bf16.mxu0 0
      %320 = vmatpush1.bf16.msra.mxu0 %v284
      %321 = vmatprep.subr.bf16.mxu0 0
      %322 = vmatpush1.bf16.msra.mxu0 %v285
      %323 = vmatprep.subr.bf16.mxu0 0
      %324 = vmatpush1.bf16.msra.mxu0 %v286
      %325 = vmatprep.subr.bf16.mxu0 0
      %326 = vmatpush1.bf16.msra.mxu0 %v287
      %327 = vmatprep.subr.bf16.mxu0 0
      %328 = vmatpush1.bf16.msra.mxu0 %v288
      %329 = vmatprep.subr.bf16.mxu0 0
      %330 = vmatpush1.bf16.msra.mxu0 %v289
      %331 = vmatprep.subr.bf16.mxu0 0
      %332 = vmatpush1.bf16.msra.mxu0 %v290
      %333 = vmatprep.subr.bf16.mxu0 0
      %334 = vmatpush1.bf16.msra.mxu0 %v291
      %335 = vmatprep.subr.bf16.mxu0 0
      %336 = vmatpush1.bf16.msra.mxu0 %v292
      %337 = vmatprep.subr.bf16.mxu0 0
      %338 = vmatpush1.bf16.msra.mxu0 %v293
      %339 = vmatprep.subr.bf16.mxu0 0
      %340 = vmatpush1.bf16.msra.mxu0 %v294
      %341 = vmatprep.subr.bf16.mxu0 0
      %342 = vmatpush1.bf16.msra.mxu0 %v295
      %343 = vmatprep.subr.bf16.mxu0 0
      %344 = vmatpush1.bf16.msra.mxu0 %v296
      %345 = vmatprep.mubr.bf16.mxu0 %v214
      %346 = vmatmul.mubr.bf16.gmra.mrb[0].mxu0 %v213
      %v347 = vpop.f32.mrb[0].mxu0
      %v348 = vadd.f32 %v208, %v347
      %v349 = vpop.f32.mrb[0].mxu0
      %v350 = vpop.f32.mrb[0].mxu0
      %v351 = vpop.f32.mrb[0].mxu0
      %352 = vdwg.mxu0
      %v353 = vmax.f32 %v348, 0.0
      %v354 = vpack.c.bf16 %v353, %v353
      %355 = vst [vmem:[%s168] sm:$0xf] %v354
      %p356 = scmp.lt.s32.totalorder %s14, 2
      %s357 = scalar_select %p356, %s14, 2
      %s358 = smul.addr %s357, 4
      %s359 = scalar_lea.vmem %s3, %s358
      // Predicated region
      $region33: #{atari_catdqn_forward.4} parent=31 // pred_check
        %p360 = pneg %p100
      $region34: #{atari_catdqn_forward.4} parent=31 // pred_check_branch
        %362 = sbr.rel (%p360) target = $region36
      $region35: #{atari_catdqn_forward.4} parent=31 // pred_region
        _
      $region36: #{atari_catdqn_forward.4} parent=31 // pred_fallthru
        _
    $region32: #{atari_catdqn_forward.4} parent=5 // pred_fallthru
      _
    %p363 = scmp.le.s32.totalorder 2, %s9
    // Predicated region
    $region37: #{atari_catdqn_forward.4} parent=5 // pred_check
      %p364 = pneg %p363
    $region38: #{atari_catdqn_forward.4} parent=5 // pred_check_branch
      %366 = sbr.rel (%p364) target = $region40
    $region39: #{atari_catdqn_forward.4} parent=5 // pred_region
      %s367 = ssub.s32 %s9, 2
      // Predicated region
      $region41: #{atari_catdqn_forward.4} parent=39 // pred_check
        %p368 = pneg %p106
      $region42: #{atari_catdqn_forward.4} parent=39 // pred_check_branch
        %370 = sbr.rel (%p368) target = $region44
      $region43: #{atari_catdqn_forward.4} parent=39 // pred_region
        %p371 = scmp.lt.s32.totalorder %s15, 2
        %s372 = scalar_select %p371, %s15, 2
        %s373 = smul.addr %s372, 4
        %s374 = scalar_lea.vmem %s3, %s373
      $region44: #{atari_catdqn_forward.4} parent=39 // pred_fallthru
        _
    $region40: #{atari_catdqn_forward.4} parent=5 // pred_fallthru
      _
  $region6: #{atari_catdqn_forward.4} parent=0 // loop_footer
    %s13 = sadd.s32 1, %s9
  $region7: #{atari_catdqn_forward.4} parent=0 // loop_footer_branch
    %8 = sbr.rel target = $region3
  $region8: #{atari_catdqn_forward.4} parent=0 // loop_exit
    _

// kernel: atari_catdqn_forward.5
$region0: #{atari_catdqn_forward.5}
  #allocation0 [shape = 'u32[]', space=smem, size = 0x4, offset = 0x4, fixed_abs, tag = 'smem constant byte address 0x4 - core index']
  #allocation1 [shape = 'u32[144,128]{1,0:T(1,128)}', space=vmem, size = 0x12000, scoped, tag = 'internal scratch']
  %s0 = inlined_call_operand.vmem [shape: bf16[8,512], index: 0, kind: input, shape index: {}]
  %s1 = inlined_call_operand.vmem [shape: bf16[512,128], index: 1, kind: input, shape index: {}]
  %s2 = inlined_call_operand.vmem [shape: f32[1,128], index: 2, kind: input, shape index: {}]
  %s3 = inlined_call_operand.vmem [shape: bf16[8,128], index: 3, kind: output, shape index: {}]
  %s4 = sld [smem:[#allocation0]]
  $region22: #{atari_catdqn_forward.5} parent=0
    _
  %s6 = ssub.s32 1, %s4
  %s7 = scalar_select 0, %s6, %s4
  // Predicated region
  $region2: #{atari_catdqn_forward.5} parent=0 // pred_check
    _
  $region3: #{atari_catdqn_forward.5} parent=0 // pred_check_branch
    %9 = sbr.rel (0) target = $region5
  $region4: #{atari_catdqn_forward.5} parent=0 // pred_region
    _
  $region5: #{atari_catdqn_forward.5} parent=0 // pred_fallthru
    _
  // Predicated region
  $region6: #{atari_catdqn_forward.5} parent=0 // pred_check
    _
  $region7: #{atari_catdqn_forward.5} parent=0 // pred_check_branch
    %11 = sbr.rel (0) target = $region9
  $region8: #{atari_catdqn_forward.5} parent=0 // pred_region
    _
  $region9: #{atari_catdqn_forward.5} parent=0 // pred_fallthru
    _
  // Predicated region
  $region10: #{atari_catdqn_forward.5} parent=0 // pred_check
    _
  $region11: #{atari_catdqn_forward.5} parent=0 // pred_check_branch
    %13 = sbr.rel (0) target = $region13
  $region12: #{atari_catdqn_forward.5} parent=0 // pred_region
    _
  $region13: #{atari_catdqn_forward.5} parent=0 // pred_fallthru
    _
  %v15 = vld [vmem:[%s0] sm:$0xff]
  %v16 = vld [vmem:[%s0 + $0x8] sm:$0xff]
  %v17 = vld [vmem:[%s1] sm:$0xf]
  %v18 = vld [vmem:[%s1 + $0x4] sm:$0xf]
  %v19 = vld [vmem:[%s1 + $0x8] sm:$0xf]
  %v20 = vld [vmem:[%s1 + $0xc] sm:$0xf]
  %v21 = vld [vmem:[%s1 + $0x10] sm:$0xf]
  %v22 = vld [vmem:[%s1 + $0x14] sm:$0xf]
  %v23 = vld [vmem:[%s1 + $0x18] sm:$0xf]
  %v24 = vld [vmem:[%s1 + $0x1c] sm:$0xf]
  %v25 = vld [vmem:[%s1 + $0x20] sm:$0xf]
  %v26 = vld [vmem:[%s1 + $0x24] sm:$0xf]
  %v27 = vld [vmem:[%s1 + $0x28] sm:$0xf]
  %v28 = vld [vmem:[%s1 + $0x2c] sm:$0xf]
  %v29 = vld [vmem:[%s1 + $0x30] sm:$0xf]
  %v30 = vld [vmem:[%s1 + $0x34] sm:$0xf]
  %v31 = vld [vmem:[%s1 + $0x38] sm:$0xf]
  %v32 = vld [vmem:[%s1 + $0x3c] sm:$0xf]
  %v33 = vld [vmem:[%s1 + $0x40] sm:$0xf]
  %v34 = vld [vmem:[%s1 + $0x44] sm:$0xf]
  %v35 = vld [vmem:[%s1 + $0x48] sm:$0xf]
  %v36 = vld [vmem:[%s1 + $0x4c] sm:$0xf]
  %v37 = vld [vmem:[%s1 + $0x50] sm:$0xf]
  %v38 = vld [vmem:[%s1 + $0x54] sm:$0xf]
  %v39 = vld [vmem:[%s1 + $0x58] sm:$0xf]
  %v40 = vld [vmem:[%s1 + $0x5c] sm:$0xf]
  %v41 = vld [vmem:[%s1 + $0x60] sm:$0xf]
  %v42 = vld [vmem:[%s1 + $0x64] sm:$0xf]
  %v43 = vld [vmem:[%s1 + $0x68] sm:$0xf]
  %v44 = vld [vmem:[%s1 + $0x6c] sm:$0xf]
  %v45 = vld [vmem:[%s1 + $0x70] sm:$0xf]
  %v46 = vld [vmem:[%s1 + $0x74] sm:$0xf]
  %v47 = vld [vmem:[%s1 + $0x78] sm:$0xf]
  %v48 = vld [vmem:[%s1 + $0x7c] sm:$0xf]
  %v49 = vld [vmem:[%s1 + $0x80] sm:$0xf]
  %v50 = vld [vmem:[%s1 + $0x84] sm:$0xf]
  %v51 = vld [vmem:[%s1 + $0x88] sm:$0xf]
  %v52 = vld [vmem:[%s1 + $0x8c] sm:$0xf]
  %v53 = vld [vmem:[%s1 + $0x90] sm:$0xf]
  %v54 = vld [vmem:[%s1 + $0x94] sm:$0xf]
  %v55 = vld [vmem:[%s1 + $0x98] sm:$0xf]
  %v56 = vld [vmem:[%s1 + $0x9c] sm:$0xf]
  %v57 = vld [vmem:[%s1 + $0xa0] sm:$0xf]
  %v58 = vld [vmem:[%s1 + $0xa4] sm:$0xf]
  %v59 = vld [vmem:[%s1 + $0xa8] sm:$0xf]
  %v60 = vld [vmem:[%s1 + $0xac] sm:$0xf]
  %v61 = vld [vmem:[%s1 + $0xb0] sm:$0xf]
  %v62 = vld [vmem:[%s1 + $0xb4] sm:$0xf]
  %v63 = vld [vmem:[%s1 + $0xb8] sm:$0xf]
  %v64 = vld [vmem:[%s1 + $0xbc] sm:$0xf]
  %v65 = vld [vmem:[%s1 + $0xc0] sm:$0xf]
  %v66 = vld [vmem:[%s1 + $0xc4] sm:$0xf]
  %v67 = vld [vmem:[%s1 + $0xc8] sm:$0xf]
  %v68 = vld [vmem:[%s1 + $0xcc] sm:$0xf]
  %v69 = vld [vmem:[%s1 + $0xd0] sm:$0xf]
  %v70 = vld [vmem:[%s1 + $0xd4] sm:$0xf]
  %v71 = vld [vmem:[%s1 + $0xd8] sm:$0xf]
  %v72 = vld [vmem:[%s1 + $0xdc] sm:$0xf]
  %v73 = vld [vmem:[%s1 + $0xe0] sm:$0xf]
  %v74 = vld [vmem:[%s1 + $0xe4] sm:$0xf]
  %v75 = vld [vmem:[%s1 + $0xe8] sm:$0xf]
  %v76 = vld [vmem:[%s1 + $0xec] sm:$0xf]
  %v77 = vld [vmem:[%s1 + $0xf0] sm:$0xf]
  %v78 = vld [vmem:[%s1 + $0xf4] sm:$0xf]
  %v79 = vld [vmem:[%s1 + $0xf8] sm:$0xf]
  %v80 = vld [vmem:[%s1 + $0xfc] sm:$0xf]
  %v81 = vld [vmem:[%s2] sm:$0x1]
  %v83 = vlaneseq
  %v84 = vshrl.u32 %v83, 7
  %v85 = vsub.s32 0, %v84
  %v86 = vrot.slane %v81, %v85
  %v90 = vunpack.c.l.b16 %v15
  %v91 = vunpack.c.h.b16 %v15
  %v92 = vunpack.c.l.b16 %v16
  %v93 = vunpack.c.h.b16 %v16
  %v94 = vpack.c.b16 %v90, %v90
  %v95 = vpack.c.b16 %v91, %v91
  %v96 = vpack.c.b16 %v92, %v92
  %v97 = vpack.c.b16 %v93, %v93
  %v166 = vunpack.c.l.b16 %v17
  %v167 = vunpack.c.l.b16 %v18
  %v168 = vunpack.c.l.b16 %v19
  %v169 = vunpack.c.l.b16 %v20
  %v170 = vunpack.c.l.b16 %v21
  %v171 = vunpack.c.l.b16 %v22
  %v172 = vunpack.c.l.b16 %v23
  %v173 = vunpack.c.l.b16 %v24
  %v174 = vunpack.c.l.b16 %v25
  %v175 = vunpack.c.l.b16 %v26
  %v176 = vunpack.c.l.b16 %v27
  %v177 = vunpack.c.l.b16 %v28
  %v178 = vunpack.c.l.b16 %v29
  %v179 = vunpack.c.l.b16 %v30
  %v180 = vunpack.c.l.b16 %v31
  %v181 = vunpack.c.l.b16 %v32
  %v182 = vunpack.c.l.b16 %v33
  %v183 = vunpack.c.l.b16 %v34
  %v184 = vunpack.c.l.b16 %v35
  %v185 = vunpack.c.l.b16 %v36
  %v186 = vunpack.c.l.b16 %v37
  %v187 = vunpack.c.l.b16 %v38
  %v188 = vunpack.c.l.b16 %v39
  %v189 = vunpack.c.l.b16 %v40
  %v190 = vunpack.c.l.b16 %v41
  %v191 = vunpack.c.l.b16 %v42
  %v192 = vunpack.c.l.b16 %v43
  %v193 = vunpack.c.l.b16 %v44
  %v194 = vunpack.c.l.b16 %v45
  %v195 = vunpack.c.l.b16 %v46
  %v196 = vunpack.c.l.b16 %v47
  %v197 = vunpack.c.l.b16 %v48
  %v198 = vunpack.c.l.b16 %v49
  %v199 = vunpack.c.l.b16 %v50
  %v200 = vunpack.c.l.b16 %v51
  %v201 = vunpack.c.l.b16 %v52
  %v202 = vunpack.c.l.b16 %v53
  %v203 = vunpack.c.l.b16 %v54
  %v204 = vunpack.c.l.b16 %v55
  %v205 = vunpack.c.l.b16 %v56
  %v206 = vunpack.c.l.b16 %v57
  %v207 = vunpack.c.l.b16 %v58
  %v208 = vunpack.c.l.b16 %v59
  %v209 = vunpack.c.l.b16 %v60
  %v210 = vunpack.c.l.b16 %v61
  %v211 = vunpack.c.l.b16 %v62
  %v212 = vunpack.c.l.b16 %v63
  %v213 = vunpack.c.l.b16 %v64
  %v214 = vunpack.c.l.b16 %v65
  %v215 = vunpack.c.l.b16 %v66
  %v216 = vunpack.c.l.b16 %v67
  %v217 = vunpack.c.l.b16 %v68
  %v218 = vunpack.c.l.b16 %v69
  %v219 = vunpack.c.l.b16 %v70
  %v220 = vunpack.c.l.b16 %v71
  %v221 = vunpack.c.l.b16 %v72
  %v222 = vunpack.c.l.b16 %v73
  %v223 = vunpack.c.l.b16 %v74
  %v224 = vunpack.c.l.b16 %v75
  %v225 = vunpack.c.l.b16 %v76
  %v226 = vunpack.c.l.b16 %v77
  %v227 = vunpack.c.l.b16 %v78
  %v228 = vunpack.c.l.b16 %v79
  %v229 = vunpack.c.l.b16 %v80
  %v230 = vpack.c.b16 %v167, %v166
  %v231 = vpack.c.b16 %v169, %v168
  %v232 = vpack.c.b16 %v171, %v170
  %v233 = vpack.c.b16 %v173, %v172
  %v234 = vpack.c.b16 %v175, %v174
  %v235 = vpack.c.b16 %v177, %v176
  %v236 = vpack.c.b16 %v179, %v178
  %v237 = vpack.c.b16 %v181, %v180
  %v238 = vpack.c.b16 %v183, %v182
  %v239 = vpack.c.b16 %v185, %v184
  %v240 = vpack.c.b16 %v187, %v186
  %v241 = vpack.c.b16 %v189, %v188
  %v242 = vpack.c.b16 %v191, %v190
  %v243 = vpack.c.b16 %v193, %v192
  %v244 = vpack.c.b16 %v195, %v194
  %v245 = vpack.c.b16 %v197, %v196
  %v246 = vpack.c.b16 %v199, %v198
  %v247 = vpack.c.b16 %v201, %v200
  %v248 = vpack.c.b16 %v203, %v202
  %v249 = vpack.c.b16 %v205, %v204
  %v250 = vpack.c.b16 %v207, %v206
  %v251 = vpack.c.b16 %v209, %v208
  %v252 = vpack.c.b16 %v211, %v210
  %v253 = vpack.c.b16 %v213, %v212
  %v254 = vpack.c.b16 %v215, %v214
  %v255 = vpack.c.b16 %v217, %v216
  %v256 = vpack.c.b16 %v219, %v218
  %v257 = vpack.c.b16 %v221, %v220
  %v258 = vpack.c.b16 %v223, %v222
  %v259 = vpack.c.b16 %v225, %v224
  %v260 = vpack.c.b16 %v227, %v226
  %v261 = vpack.c.b16 %v229, %v228
  %294 = vmatprep.subr.bf16.mxu0 0
  %295 = vmatpush1.bf16.msra.mxu0 %v230
  %296 = vmatprep.subr.bf16.mxu0 0
  %297 = vmatpush1.bf16.msra.mxu0 %v231
  %298 = vmatprep.subr.bf16.mxu0 0
  %299 = vmatpush1.bf16.msra.mxu0 %v232
  %300 = vmatprep.subr.bf16.mxu0 0
  %301 = vmatpush1.bf16.msra.mxu0 %v233
  %302 = vmatprep.subr.bf16.mxu0 0
  %303 = vmatpush1.bf16.msra.mxu0 %v234
  %304 = vmatprep.subr.bf16.mxu0 0
  %305 = vmatpush1.bf16.msra.mxu0 %v235
  %306 = vmatprep.subr.bf16.mxu0 0
  %307 = vmatpush1.bf16.msra.mxu0 %v236
  %308 = vmatprep.subr.bf16.mxu0 0
  %309 = vmatpush1.bf16.msra.mxu0 %v237
  %310 = vmatprep.subr.bf16.mxu0 0
  %311 = vmatpush1.bf16.msra.mxu0 %v238
  %312 = vmatprep.subr.bf16.mxu0 0
  %313 = vmatpush1.bf16.msra.mxu0 %v239
  %314 = vmatprep.subr.bf16.mxu0 0
  %315 = vmatpush1.bf16.msra.mxu0 %v240
  %316 = vmatprep.subr.bf16.mxu0 0
  %317 = vmatpush1.bf16.msra.mxu0 %v241
  %318 = vmatprep.subr.bf16.mxu0 0
  %319 = vmatpush1.bf16.msra.mxu0 %v242
  %320 = vmatprep.subr.bf16.mxu0 0
  %321 = vmatpush1.bf16.msra.mxu0 %v243
  %322 = vmatprep.subr.bf16.mxu0 0
  %323 = vmatpush1.bf16.msra.mxu0 %v244
  %324 = vmatprep.subr.bf16.mxu0 0
  %325 = vmatpush1.bf16.msra.mxu0 %v245
  %326 = vmatprep.mubr.bf16.mxu0 %v95
  %327 = vmatmul.mubr.bf16.gmra.mrb[0].mxu0 %v94
  %v328 = vpop.f32.mrb[0].mxu0
  %v329 = vadd.f32 %v86, %v328
  %v330 = vpop.f32.mrb[0].mxu0
  %v331 = vpop.f32.mrb[0].mxu0
  %v332 = vpop.f32.mrb[0].mxu0
  %333 = vdwg.mxu0
  %334 = vmatprep.subr.bf16.mxu0 0
  %335 = vmatpush1.bf16.msra.mxu0 %v246
  %336 = vmatprep.subr.bf16.mxu0 0
  %337 = vmatpush1.bf16.msra.mxu0 %v247
  %338 = vmatprep.subr.bf16.mxu0 0
  %339 = vmatpush1.bf16.msra.mxu0 %v248
  %340 = vmatprep.subr.bf16.mxu0 0
  %341 = vmatpush1.bf16.msra.mxu0 %v249
  %342 = vmatprep.subr.bf16.mxu0 0
  %343 = vmatpush1.bf16.msra.mxu0 %v250
  %344 = vmatprep.subr.bf16.mxu0 0
  %345 = vmatpush1.bf16.msra.mxu0 %v251
  %346 = vmatprep.subr.bf16.mxu0 0
  %347 = vmatpush1.bf16.msra.mxu0 %v252
  %348 = vmatprep.subr.bf16.mxu0 0
  %349 = vmatpush1.bf16.msra.mxu0 %v253
  %350 = vmatprep.subr.bf16.mxu0 0
  %351 = vmatpush1.bf16.msra.mxu0 %v254
  %352 = vmatprep.subr.bf16.mxu0 0
  %353 = vmatpush1.bf16.msra.mxu0 %v255
  %354 = vmatprep.subr.bf16.mxu0 0
  %355 = vmatpush1.bf16.msra.mxu0 %v256
  %356 = vmatprep.subr.bf16.mxu0 0
  %357 = vmatpush1.bf16.msra.mxu0 %v257
  %358 = vmatprep.subr.bf16.mxu0 0
  %359 = vmatpush1.bf16.msra.mxu0 %v258
  %360 = vmatprep.subr.bf16.mxu0 0
  %361 = vmatpush1.bf16.msra.mxu0 %v259
  %362 = vmatprep.subr.bf16.mxu0 0
  %363 = vmatpush1.bf16.msra.mxu0 %v260
  %364 = vmatprep.subr.bf16.mxu0 0
  %365 = vmatpush1.bf16.msra.mxu0 %v261
  %366 = vmatprep.mubr.bf16.mxu0 %v97
  %367 = vmatmul.mubr.bf16.gmra.mrb[0].mxu0 %v96
  %v368 = vpop.f32.mrb[0].mxu0
  %v369 = vadd.f32 %v329, %v368
  %v370 = vpop.f32.mrb[0].mxu0
  %v371 = vpop.f32.mrb[0].mxu0
  %v372 = vpop.f32.mrb[0].mxu0
  %373 = vdwg.mxu0
  %v374 = vmax.f32 %v369, 0.0
  %v375 = vpack.c.bf16 %v374, %v374
  %376 = vst [vmem:[%s3] sm:$0xf] %v375
  // Predicated region
  $region14: #{atari_catdqn_forward.5} parent=0 // pred_check
    _
  $region15: #{atari_catdqn_forward.5} parent=0 // pred_check_branch
    %378 = sbr.rel (0) target = $region17
  $region16: #{atari_catdqn_forward.5} parent=0 // pred_region
    _
  $region17: #{atari_catdqn_forward.5} parent=0 // pred_fallthru
    _
  // Predicated region
  $region18: #{atari_catdqn_forward.5} parent=0 // pred_check
    _
  $region19: #{atari_catdqn_forward.5} parent=0 // pred_check_branch
    %380 = sbr.rel (0) target = $region21
  $region20: #{atari_catdqn_forward.5} parent=0 // pred_region
    _
  $region21: #{atari_catdqn_forward.5} parent=0 // pred_fallthru
    _

// kernel: atari_catdqn_forward.6
$region0: #{atari_catdqn_forward.6}
  #allocation0 [shape = 'u32[]', space=smem, size = 0x4, offset = 0x4, fixed_abs, tag = 'smem constant byte address 0x4 - core index']
  #allocation1 [shape = 'u32[144,128]{1,0:T(1,128)}', space=vmem, size = 0x12000, scoped, tag = 'internal scratch']
  %s0 = inlined_call_operand.vmem [shape: bf16[8,576], index: 0, kind: input, shape index: {}]
  %s1 = inlined_call_operand.vmem [shape: bf16[576,128], index: 1, kind: input, shape index: {}]
  %s2 = inlined_call_operand.vmem [shape: f32[1,128], index: 2, kind: input, shape index: {}]
  %s3 = inlined_call_operand.vmem [shape: bf16[8,128], index: 3, kind: output, shape index: {}]
  %s4 = sld [smem:[#allocation0]]
  $region22: #{atari_catdqn_forward.6} parent=0
    _
  %s6 = ssub.s32 1, %s4
  %s7 = scalar_select 0, %s6, %s4
  // Predicated region
  $region2: #{atari_catdqn_forward.6} parent=0 // pred_check
    _
  $region3: #{atari_catdqn_forward.6} parent=0 // pred_check_branch
    %9 = sbr.rel (0) target = $region5
  $region4: #{atari_catdqn_forward.6} parent=0 // pred_region
    _
  $region5: #{atari_catdqn_forward.6} parent=0 // pred_fallthru
    _
  // Predicated region
  $region6: #{atari_catdqn_forward.6} parent=0 // pred_check
    _
  $region7: #{atari_catdqn_forward.6} parent=0 // pred_check_branch
    %11 = sbr.rel (0) target = $region9
  $region8: #{atari_catdqn_forward.6} parent=0 // pred_region
    _
  $region9: #{atari_catdqn_forward.6} parent=0 // pred_fallthru
    _
  // Predicated region
  $region10: #{atari_catdqn_forward.6} parent=0 // pred_check
    _
  $region11: #{atari_catdqn_forward.6} parent=0 // pred_check_branch
    %13 = sbr.rel (0) target = $region13
  $region12: #{atari_catdqn_forward.6} parent=0 // pred_region
    _
  $region13: #{atari_catdqn_forward.6} parent=0 // pred_fallthru
    _
  %v15 = vld [vmem:[%s0] sm:$0xff]
  %v16 = vld [vmem:[%s0 + $0x8] sm:$0xff]
  %v17 = vld [vmem:[%s0 + $0x10] sm:$0xf]
  %v18 = vld [vmem:[%s1] sm:$0xf]
  %v19 = vld [vmem:[%s1 + $0x4] sm:$0xf]
  %v20 = vld [vmem:[%s1 + $0x8] sm:$0xf]
  %v21 = vld [vmem:[%s1 + $0xc] sm:$0xf]
  %v22 = vld [vmem:[%s1 + $0x10] sm:$0xf]
  %v23 = vld [vmem:[%s1 + $0x14] sm:$0xf]
  %v24 = vld [vmem:[%s1 + $0x18] sm:$0xf]
  %v25 = vld [vmem:[%s1 + $0x1c] sm:$0xf]
  %v26 = vld [vmem:[%s1 + $0x20] sm:$0xf]
  %v27 = vld [vmem:[%s1 + $0x24] sm:$0xf]
  %v28 = vld [vmem:[%s1 + $0x28] sm:$0xf]
  %v29 = vld [vmem:[%s1 + $0x2c] sm:$0xf]
  %v30 = vld [vmem:[%s1 + $0x30] sm:$0xf]
  %v31 = vld [vmem:[%s1 + $0x34] sm:$0xf]
  %v32 = vld [vmem:[%s1 + $0x38] sm:$0xf]
  %v33 = vld [vmem:[%s1 + $0x3c] sm:$0xf]
  %v34 = vld [vmem:[%s1 + $0x40] sm:$0xf]
  %v35 = vld [vmem:[%s1 + $0x44] sm:$0xf]
  %v36 = vld [vmem:[%s1 + $0x48] sm:$0xf]
  %v37 = vld [vmem:[%s1 + $0x4c] sm:$0xf]
  %v38 = vld [vmem:[%s1 + $0x50] sm:$0xf]
  %v39 = vld [vmem:[%s1 + $0x54] sm:$0xf]
  %v40 = vld [vmem:[%s1 + $0x58] sm:$0xf]
  %v41 = vld [vmem:[%s1 + $0x5c] sm:$0xf]
  %v42 = vld [vmem:[%s1 + $0x60] sm:$0xf]
  %v43 = vld [vmem:[%s1 + $0x64] sm:$0xf]
  %v44 = vld [vmem:[%s1 + $0x68] sm:$0xf]
  %v45 = vld [vmem:[%s1 + $0x6c] sm:$0xf]
  %v46 = vld [vmem:[%s1 + $0x70] sm:$0xf]
  %v47 = vld [vmem:[%s1 + $0x74] sm:$0xf]
  %v48 = vld [vmem:[%s1 + $0x78] sm:$0xf]
  %v49 = vld [vmem:[%s1 + $0x7c] sm:$0xf]
  %v50 = vld [vmem:[%s1 + $0x80] sm:$0xf]
  %v51 = vld [vmem:[%s1 + $0x84] sm:$0xf]
  %v52 = vld [vmem:[%s1 + $0x88] sm:$0xf]
  %v53 = vld [vmem:[%s1 + $0x8c] sm:$0xf]
  %v54 = vld [vmem:[%s1 + $0x90] sm:$0xf]
  %v55 = vld [vmem:[%s1 + $0x94] sm:$0xf]
  %v56 = vld [vmem:[%s1 + $0x98] sm:$0xf]
  %v57 = vld [vmem:[%s1 + $0x9c] sm:$0xf]
  %v58 = vld [vmem:[%s1 + $0xa0] sm:$0xf]
  %v59 = vld [vmem:[%s1 + $0xa4] sm:$0xf]
  %v60 = vld [vmem:[%s1 + $0xa8] sm:$0xf]
  %v61 = vld [vmem:[%s1 + $0xac] sm:$0xf]
  %v62 = vld [vmem:[%s1 + $0xb0] sm:$0xf]
  %v63 = vld [vmem:[%s1 + $0xb4] sm:$0xf]
  %v64 = vld [vmem:[%s1 + $0xb8] sm:$0xf]
  %v65 = vld [vmem:[%s1 + $0xbc] sm:$0xf]
  %v66 = vld [vmem:[%s1 + $0xc0] sm:$0xf]
  %v67 = vld [vmem:[%s1 + $0xc4] sm:$0xf]
  %v68 = vld [vmem:[%s1 + $0xc8] sm:$0xf]
  %v69 = vld [vmem:[%s1 + $0xcc] sm:$0xf]
  %v70 = vld [vmem:[%s1 + $0xd0] sm:$0xf]
  %v71 = vld [vmem:[%s1 + $0xd4] sm:$0xf]
  %v72 = vld [vmem:[%s1 + $0xd8] sm:$0xf]
  %v73 = vld [vmem:[%s1 + $0xdc] sm:$0xf]
  %v74 = vld [vmem:[%s1 + $0xe0] sm:$0xf]
  %v75 = vld [vmem:[%s1 + $0xe4] sm:$0xf]
  %v76 = vld [vmem:[%s1 + $0xe8] sm:$0xf]
  %v77 = vld [vmem:[%s1 + $0xec] sm:$0xf]
  %v78 = vld [vmem:[%s1 + $0xf0] sm:$0xf]
  %v79 = vld [vmem:[%s1 + $0xf4] sm:$0xf]
  %v80 = vld [vmem:[%s1 + $0xf8] sm:$0xf]
  %v81 = vld [vmem:[%s1 + $0xfc] sm:$0xf]
  %v82 = vld [vmem:[%s1 + $0x100] sm:$0xf]
  %v83 = vld [vmem:[%s1 + $0x104] sm:$0xf]
  %v84 = vld [vmem:[%s1 + $0x108] sm:$0xf]
  %v85 = vld [vmem:[%s1 + $0x10c] sm:$0xf]
  %v86 = vld [vmem:[%s1 + $0x110] sm:$0xf]
  %v87 = vld [vmem:[%s1 + $0x114] sm:$0xf]
  %v88 = vld [vmem:[%s1 + $0x118] sm:$0xf]
  %v89 = vld [vmem:[%s1 + $0x11c] sm:$0xf]
  %v90 = vld [vmem:[%s2] sm:$0x1]
  %v92 = vlaneseq
  %v93 = vshrl.u32 %v92, 7
  %v94 = vsub.s32 0, %v93
  %v95 = vrot.slane %v90, %v94
  %v100 = vunpack.c.l.b16 %v15
  %v101 = vunpack.c.h.b16 %v15
  %v102 = vunpack.c.l.b16 %v16
  %v103 = vunpack.c.h.b16 %v16
  %v104 = vunpack.c.l.b16 %v17
  %v105 = vpack.c.b16 %v100, %v100
  %v106 = vpack.c.b16 %v101, %v101
  %v107 = vpack.c.b16 %v102, %v102
  %v108 = vpack.c.b16 %v103, %v103
  %v109 = vpack.c.b16 %v104, %v104
  %v186 = vunpack.c.l.b16 %v18
  %v187 = vunpack.c.l.b16 %v19
  %v188 = vunpack.c.l.b16 %v20
  %v189 = vunpack.c.l.b16 %v21
  %v190 = vunpack.c.l.b16 %v22
  %v191 = vunpack.c.l.b16 %v23
  %v192 = vunpack.c.l.b16 %v24
  %v193 = vunpack.c.l.b16 %v25
  %v194 = vunpack.c.l.b16 %v26
  %v195 = vunpack.c.l.b16 %v27
  %v196 = vunpack.c.l.b16 %v28
  %v197 = vunpack.c.l.b16 %v29
  %v198 = vunpack.c.l.b16 %v30
  %v199 = vunpack.c.l.b16 %v31
  %v200 = vunpack.c.l.b16 %v32
  %v201 = vunpack.c.l.b16 %v33
  %v202 = vunpack.c.l.b16 %v34
  %v203 = vunpack.c.l.b16 %v35
  %v204 = vunpack.c.l.b16 %v36
  %v205 = vunpack.c.l.b16 %v37
  %v206 = vunpack.c.l.b16 %v38
  %v207 = vunpack.c.l.b16 %v39
  %v208 = vunpack.c.l.b16 %v40
  %v209 = vunpack.c.l.b16 %v41
  %v210 = vunpack.c.l.b16 %v42
  %v211 = vunpack.c.l.b16 %v43
  %v212 = vunpack.c.l.b16 %v44
  %v213 = vunpack.c.l.b16 %v45
  %v214 = vunpack.c.l.b16 %v46
  %v215 = vunpack.c.l.b16 %v47
  %v216 = vunpack.c.l.b16 %v48
  %v217 = vunpack.c.l.b16 %v49
  %v218 = vunpack.c.l.b16 %v50
  %v219 = vunpack.c.l.b16 %v51
  %v220 = vunpack.c.l.b16 %v52
  %v221 = vunpack.c.l.b16 %v53
  %v222 = vunpack.c.l.b16 %v54
  %v223 = vunpack.c.l.b16 %v55
  %v224 = vunpack.c.l.b16 %v56
  %v225 = vunpack.c.l.b16 %v57
  %v226 = vunpack.c.l.b16 %v58
  %v227 = vunpack.c.l.b16 %v59
  %v228 = vunpack.c.l.b16 %v60
  %v229 = vunpack.c.l.b16 %v61
  %v230 = vunpack.c.l.b16 %v62
  %v231 = vunpack.c.l.b16 %v63
  %v232 = vunpack.c.l.b16 %v64
  %v233 = vunpack.c.l.b16 %v65
  %v234 = vunpack.c.l.b16 %v66
  %v235 = vunpack.c.l.b16 %v67
  %v236 = vunpack.c.l.b16 %v68
  %v237 = vunpack.c.l.b16 %v69
  %v238 = vunpack.c.l.b16 %v70
  %v239 = vunpack.c.l.b16 %v71
  %v240 = vunpack.c.l.b16 %v72
  %v241 = vunpack.c.l.b16 %v73
  %v242 = vunpack.c.l.b16 %v74
  %v243 = vunpack.c.l.b16 %v75
  %v244 = vunpack.c.l.b16 %v76
  %v245 = vunpack.c.l.b16 %v77
  %v246 = vunpack.c.l.b16 %v78
  %v247 = vunpack.c.l.b16 %v79
  %v248 = vunpack.c.l.b16 %v80
  %v249 = vunpack.c.l.b16 %v81
  %v250 = vunpack.c.l.b16 %v82
  %v251 = vunpack.c.l.b16 %v83
  %v252 = vunpack.c.l.b16 %v84
  %v253 = vunpack.c.l.b16 %v85
  %v254 = vunpack.c.l.b16 %v86
  %v255 = vunpack.c.l.b16 %v87
  %v256 = vunpack.c.l.b16 %v88
  %v257 = vunpack.c.l.b16 %v89
  %v258 = vpack.c.b16 %v187, %v186
  %v259 = vpack.c.b16 %v189, %v188
  %v260 = vpack.c.b16 %v191, %v190
  %v261 = vpack.c.b16 %v193, %v192
  %v262 = vpack.c.b16 %v195, %v194
  %v263 = vpack.c.b16 %v197, %v196
  %v264 = vpack.c.b16 %v199, %v198
  %v265 = vpack.c.b16 %v201, %v200
  %v266 = vpack.c.b16 %v203, %v202
  %v267 = vpack.c.b16 %v205, %v204
  %v268 = vpack.c.b16 %v207, %v206
  %v269 = vpack.c.b16 %v209, %v208
  %v270 = vpack.c.b16 %v211, %v210
  %v271 = vpack.c.b16 %v213, %v212
  %v272 = vpack.c.b16 %v215, %v214
  %v273 = vpack.c.b16 %v217, %v216
  %v274 = vpack.c.b16 %v219, %v218
  %v275 = vpack.c.b16 %v221, %v220
  %v276 = vpack.c.b16 %v223, %v222
  %v277 = vpack.c.b16 %v225, %v224
  %v278 = vpack.c.b16 %v227, %v226
  %v279 = vpack.c.b16 %v229, %v228
  %v280 = vpack.c.b16 %v231, %v230
  %v281 = vpack.c.b16 %v233, %v232
  %v282 = vpack.c.b16 %v235, %v234
  %v283 = vpack.c.b16 %v237, %v236
  %v284 = vpack.c.b16 %v239, %v238
  %v285 = vpack.c.b16 %v241, %v240
  %v286 = vpack.c.b16 %v243, %v242
  %v287 = vpack.c.b16 %v245, %v244
  %v288 = vpack.c.b16 %v247, %v246
  %v289 = vpack.c.b16 %v249, %v248
  %v290 = vpack.c.b16 %v251, %v250
  %v291 = vpack.c.b16 %v253, %v252
  %v292 = vpack.c.b16 %v255, %v254
  %v293 = vpack.c.b16 %v257, %v256
  %vm330 = vcmask 523264
  %v332 = vsel %vm330, %v109, 0
  %334 = vmatprep.subr.bf16.mxu0 0
  %335 = vmatpush1.bf16.msra.mxu0 %v258
  %336 = vmatprep.subr.bf16.mxu0 0
  %337 = vmatpush1.bf16.msra.mxu0 %v259
  %338 = vmatprep.subr.bf16.mxu0 0
  %339 = vmatpush1.bf16.msra.mxu0 %v260
  %340 = vmatprep.subr.bf16.mxu0 0
  %341 = vmatpush1.bf16.msra.mxu0 %v261
  %342 = vmatprep.subr.bf16.mxu0 0
  %343 = vmatpush1.bf16.msra.mxu0 %v262
  %344 = vmatprep.subr.bf16.mxu0 0
  %345 = vmatpush1.bf16.msra.mxu0 %v263
  %346 = vmatprep.subr.bf16.mxu0 0
  %347 = vmatpush1.bf16.msra.mxu0 %v264
  %348 = vmatprep.subr.bf16.mxu0 0
  %349 = vmatpush1.bf16.msra.mxu0 %v265
  %350 = vmatprep.subr.bf16.mxu0 0
  %351 = vmatpush1.bf16.msra.mxu0 %v266
  %352 = vmatprep.subr.bf16.mxu0 0
  %353 = vmatpush1.bf16.msra.mxu0 %v267
  %354 = vmatprep.subr.bf16.mxu0 0
  %355 = vmatpush1.bf16.msra.mxu0 %v268
  %356 = vmatprep.subr.bf16.mxu0 0
  %357 = vmatpush1.bf16.msra.mxu0 %v269
  %358 = vmatprep.subr.bf16.mxu0 0
  %359 = vmatpush1.bf16.msra.mxu0 %v270
  %360 = vmatprep.subr.bf16.mxu0 0
  %361 = vmatpush1.bf16.msra.mxu0 %v271
  %362 = vmatprep.subr.bf16.mxu0 0
  %363 = vmatpush1.bf16.msra.mxu0 %v272
  %364 = vmatprep.subr.bf16.mxu0 0
  %365 = vmatpush1.bf16.msra.mxu0 %v273
  %366 = vmatprep.mubr.bf16.mxu0 %v106
  %367 = vmatmul.mubr.bf16.gmra.mrb[0].mxu0 %v105
  %v368 = vpop.f32.mrb[0].mxu0
  %v369 = vadd.f32 %v95, %v368
  %v370 = vpop.f32.mrb[0].mxu0
  %v371 = vpop.f32.mrb[0].mxu0
  %v372 = vpop.f32.mrb[0].mxu0
  %373 = vdwg.mxu0
  %374 = vmatprep.subr.bf16.mxu0 0
  %375 = vmatpush1.bf16.msra.mxu0 %v274
  %376 = vmatprep.subr.bf16.mxu0 0
  %377 = vmatpush1.bf16.msra.mxu0 %v275
  %378 = vmatprep.subr.bf16.mxu0 0
  %379 = vmatpush1.bf16.msra.mxu0 %v276
  %380 = vmatprep.subr.bf16.mxu0 0
  %381 = vmatpush1.bf16.msra.mxu0 %v277
  %382 = vmatprep.subr.bf16.mxu0 0
  %383 = vmatpush1.bf16.msra.mxu0 %v278
  %384 = vmatprep.subr.bf16.mxu0 0
  %385 = vmatpush1.bf16.msra.mxu0 %v279
  %386 = vmatprep.subr.bf16.mxu0 0
  %387 = vmatpush1.bf16.msra.mxu0 %v280
  %388 = vmatprep.subr.bf16.mxu0 0
  %389 = vmatpush1.bf16.msra.mxu0 %v281
  %390 = vmatprep.subr.bf16.mxu0 0
  %391 = vmatpush1.bf16.msra.mxu0 %v282
  %392 = vmatprep.subr.bf16.mxu0 0
  %393 = vmatpush1.bf16.msra.mxu0 %v283
  %394 = vmatprep.subr.bf16.mxu0 0
  %395 = vmatpush1.bf16.msra.mxu0 %v284
  %396 = vmatprep.subr.bf16.mxu0 0
  %397 = vmatpush1.bf16.msra.mxu0 %v285
  %398 = vmatprep.subr.bf16.mxu0 0
  %399 = vmatpush1.bf16.msra.mxu0 %v286
  %400 = vmatprep.subr.bf16.mxu0 0
  %401 = vmatpush1.bf16.msra.mxu0 %v287
  %402 = vmatprep.subr.bf16.mxu0 0
  %403 = vmatpush1.bf16.msra.mxu0 %v288
  %404 = vmatprep.subr.bf16.mxu0 0
  %405 = vmatpush1.bf16.msra.mxu0 %v289
  %406 = vmatprep.mubr.bf16.mxu0 %v108
  %407 = vmatmul.mubr.bf16.gmra.mrb[0].mxu0 %v107
  %v408 = vpop.f32.mrb[0].mxu0
  %v409 = vadd.f32 %v369, %v408
  %v410 = vpop.f32.mrb[0].mxu0
  %v411 = vpop.f32.mrb[0].mxu0
  %v412 = vpop.f32.mrb[0].mxu0
  %413 = vdwg.mxu0
  %414 = vmatprep.subr.bf16.mxu0 0
  %415 = vmatpush1.bf16.msra.mxu0 %v290
  %416 = vmatprep.subr.bf16.mxu0 0
  %417 = vmatpush1.bf16.msra.mxu0 %v291
  %418 = vmatprep.subr.bf16.mxu0 0
  %419 = vmatpush1.bf16.msra.mxu0 %v292
  %420 = vmatprep.subr.bf16.mxu0 0
  %421 = vmatpush1.bf16.msra.mxu0 %v293
  %422 = vmatprep.subr.bf16.mxu0 0
  %423 = vmatpush1.bf16.msra.mxu0 0
  %424 = vmatprep.subr.bf16.mxu0 0
  %425 = vmatpush1.bf16.msra.mxu0 0
  %426 = vmatprep.subr.bf16.mxu0 0
  %427 = vmatpush1.bf16.msra.mxu0 0
  %428 = vmatprep.subr.bf16.mxu0 0
  %429 = vmatpush1.bf16.msra.mxu0 0
  %430 = vmatprep.subr.bf16.mxu0 0
  %431 = vmatpush1.bf16.msra.mxu0 0
  %432 = vmatprep.subr.bf16.mxu0 0
  %433 = vmatpush1.bf16.msra.mxu0 0
  %434 = vmatprep.subr.bf16.mxu0 0
  %435 = vmatpush1.bf16.msra.mxu0 0
  %436 = vmatprep.subr.bf16.mxu0 0
  %437 = vmatpush1.bf16.msra.mxu0 0
  %438 = vmatprep.subr.bf16.mxu0 0
  %439 = vmatpush1.bf16.msra.mxu0 0
  %440 = vmatprep.subr.bf16.mxu0 0
  %441 = vmatpush1.bf16.msra.mxu0 0
  %442 = vmatprep.subr.bf16.mxu0 0
  %443 = vmatpush1.bf16.msra.mxu0 0
  %444 = vmatprep.subr.bf16.mxu0 0
  %445 = vmatpush1.bf16.msra.mxu0 0
  %446 = vmatprep.mubr.bf16.mxu0 0
  %447 = vmatmul.mubr.bf16.gmra.mrb[0].mxu0 %v332
  %v448 = vpop.f32.mrb[0].mxu0
  %v449 = vadd.f32 %v409, %v448
  %v450 = vpop.f32.mrb[0].mxu0
  %v451 = vpop.f32.mrb[0].mxu0
  %v452 = vpop.f32.mrb[0].mxu0
  %453 = vdwg.mxu0
  %v454 = vmax.f32 %v449, 0.0
  %v455 = vpack.c.bf16 %v454, %v454
  %456 = vst [vmem:[%s3] sm:$0xf] %v455
  // Predicated region
  $region14: #{atari_catdqn_forward.6} parent=0 // pred_check
    _
  $region15: #{atari_catdqn_forward.6} parent=0 // pred_check_branch
    %458 = sbr.rel (0) target = $region17
  $region16: #{atari_catdqn_forward.6} parent=0 // pred_region
    _
  $region17: #{atari_catdqn_forward.6} parent=0 // pred_fallthru
    _
  // Predicated region
  $region18: #{atari_catdqn_forward.6} parent=0 // pred_check
    _
  $region19: #{atari_catdqn_forward.6} parent=0 // pred_check_branch
    %460 = sbr.rel (0) target = $region21
  $region20: #{atari_catdqn_forward.6} parent=0 // pred_region
    _
  $region21: #{atari_catdqn_forward.6} parent=0 // pred_fallthru
    _

// kernel: atari_catdqn_forward.7
$region0: #{atari_catdqn_forward.7}
  #allocation0 [shape = 'u32[]', space=smem, size = 0x4, offset = 0x4, fixed_abs, tag = 'smem constant byte address 0x4 - core index']
  #allocation1 [shape = 'u32[144,128]{1,0:T(1,128)}', space=vmem, size = 0x12000, scoped, tag = 'internal scratch']
  %s0 = inlined_call_operand.vmem [shape: bf16[8,64], index: 0, kind: input, shape index: {}]
  %s1 = inlined_call_operand.vmem [shape: bf16[64,128], index: 1, kind: input, shape index: {}]
  %s2 = inlined_call_operand.vmem [shape: f32[1,128], index: 2, kind: input, shape index: {}]
  %s3 = inlined_call_operand.vmem [shape: bf16[128,768], index: 3, kind: input, shape index: {}]
  %s4 = inlined_call_operand.vmem [shape: f32[1,768], index: 4, kind: input, shape index: {}]
  %s5 = inlined_call_operand.vmem [shape: f32[8,768], index: 5, kind: output, shape index: {}]
  %s6 = sld [smem:[#allocation0]]
  $region30: #{atari_catdqn_forward.7} parent=0
    _
  %s8 = ssub.s32 1, %s6
  %s9 = scalar_select 0, %s8, %s6
  // Predicated region
  $region2: #{atari_catdqn_forward.7} parent=0 // pred_check
    _
  $region3: #{atari_catdqn_forward.7} parent=0 // pred_check_branch
    %11 = sbr.rel (0) target = $region5
  $region4: #{atari_catdqn_forward.7} parent=0 // pred_region
    _
  $region5: #{atari_catdqn_forward.7} parent=0 // pred_fallthru
    _
  // Predicated region
  $region6: #{atari_catdqn_forward.7} parent=0 // pred_check
    _
  $region7: #{atari_catdqn_forward.7} parent=0 // pred_check_branch
    %13 = sbr.rel (0) target = $region9
  $region8: #{atari_catdqn_forward.7} parent=0 // pred_region
    _
  $region9: #{atari_catdqn_forward.7} parent=0 // pred_fallthru
    _
  // Predicated region
  $region10: #{atari_catdqn_forward.7} parent=0 // pred_check
    _
  $region11: #{atari_catdqn_forward.7} parent=0 // pred_check_branch
    %15 = sbr.rel (0) target = $region13
  $region12: #{atari_catdqn_forward.7} parent=0 // pred_region
    _
  $region13: #{atari_catdqn_forward.7} parent=0 // pred_fallthru
    _
  // Predicated region
  $region14: #{atari_catdqn_forward.7} parent=0 // pred_check
    _
  $region15: #{atari_catdqn_forward.7} parent=0 // pred_check_branch
    %17 = sbr.rel (0) target = $region17
  $region16: #{atari_catdqn_forward.7} parent=0 // pred_region
    _
  $region17: #{atari_catdqn_forward.7} parent=0 // pred_fallthru
    _
  // Predicated region
  $region18: #{atari_catdqn_forward.7} parent=0 // pred_check
    _
  $region19: #{atari_catdqn_forward.7} parent=0 // pred_check_branch
    %19 = sbr.rel (0) target = $region21
  $region20: #{atari_catdqn_forward.7} parent=0 // pred_region
    _
  $region21: #{atari_catdqn_forward.7} parent=0 // pred_fallthru
    _
  %v21 = vld [vmem:[%s0] sm:$0xf]
  %v22 = vld [vmem:[%s1] sm:$0xf]
  %v23 = vld [vmem:[%s1 + $0x4] sm:$0xf]
  %v24 = vld [vmem:[%s1 + $0x8] sm:$0xf]
  %v25 = vld [vmem:[%s1 + $0xc] sm:$0xf]
  %v26 = vld [vmem:[%s1 + $0x10] sm:$0xf]
  %v27 = vld [vmem:[%s1 + $0x14] sm:$0xf]
  %v28 = vld [vmem:[%s1 + $0x18] sm:$0xf]
  %v29 = vld [vmem:[%s1 + $0x1c] sm:$0xf]
  %v30 = vld [vmem:[%s2] sm:$0x1]
  %v32 = vlaneseq
  %v33 = vshrl.u32 %v32, 7
  %v34 = vsub.s32 0, %v33
  %v35 = vrot.slane %v30, %v34
  %v45 = vunpack.c.l.b16 %v22
  %v46 = vunpack.c.l.b16 %v23
  %v47 = vunpack.c.l.b16 %v24
  %v48 = vunpack.c.l.b16 %v25
  %v49 = vunpack.c.l.b16 %v26
  %v50 = vunpack.c.l.b16 %v27
  %v51 = vunpack.c.l.b16 %v28
  %v52 = vunpack.c.l.b16 %v29
  %v53 = vpack.c.b16 %v46, %v45
  %v54 = vpack.c.b16 %v48, %v47
  %v55 = vpack.c.b16 %v50, %v49
  %v56 = vpack.c.b16 %v52, %v51
  %vm61 = vcmask 523264
  %v63 = vsel %vm61, %v21, 0
  %65 = vmatprep.subr.bf16.mxu0 0
  %66 = vmatpush1.bf16.msra.mxu0 %v53
  %67 = vmatprep.subr.bf16.mxu0 0
  %68 = vmatpush1.bf16.msra.mxu0 %v54
  %69 = vmatprep.subr.bf16.mxu0 0
  %70 = vmatpush1.bf16.msra.mxu0 %v55
  %71 = vmatprep.subr.bf16.mxu0 0
  %72 = vmatpush1.bf16.msra.mxu0 %v56
  %73 = vmatprep.subr.bf16.mxu0 0
  %74 = vmatpush1.bf16.msra.mxu0 0
  %75 = vmatprep.subr.bf16.mxu0 0
  %76 = vmatpush1.bf16.msra.mxu0 0
  %77 = vmatprep.subr.bf16.mxu0 0
  %78 = vmatpush1.bf16.msra.mxu0 0
  %79 = vmatprep.subr.bf16.mxu0 0
  %80 = vmatpush1.bf16.msra.mxu0 0
  %81 = vmatprep.subr.bf16.mxu0 0
  %82 = vmatpush1.bf16.msra.mxu0 0
  %83 = vmatprep.subr.bf16.mxu0 0
  %84 = vmatpush1.bf16.msra.mxu0 0
  %85 = vmatprep.subr.bf16.mxu0 0
  %86 = vmatpush1.bf16.msra.mxu0 0
  %87 = vmatprep.subr.bf16.mxu0 0
  %88 = vmatpush1.bf16.msra.mxu0 0
  %89 = vmatprep.subr.bf16.mxu0 0
  %90 = vmatpush1.bf16.msra.mxu0 0
  %91 = vmatprep.subr.bf16.mxu0 0
  %92 = vmatpush1.bf16.msra.mxu0 0
  %93 = vmatprep.subr.bf16.mxu0 0
  %94 = vmatpush1.bf16.msra.mxu0 0
  %95 = vmatprep.subr.bf16.mxu0 0
  %96 = vmatpush1.bf16.msra.mxu0 0
  %97 = vmatprep.mubr.bf16.mxu0 0
  %98 = vmatmul.mubr.bf16.gmra.mrb[0].mxu0 %v63
  %v99 = vpop.f32.mrb[0].mxu0
  %v100 = vadd.f32 %v35, %v99
  %v101 = vpop.f32.mrb[0].mxu0
  %v102 = vpop.f32.mrb[0].mxu0
  %v103 = vpop.f32.mrb[0].mxu0
  %104 = vdwg.mxu0
  %v105 = vmax.f32 %v100, 0.0
  %v106 = vpack.c.bf16 %v105, %v105
  %v107 = vld [vmem:[%s3] sm:$0xff]
  %v108 = vld [vmem:[%s3 + $0x8] sm:$0xff]
  %v109 = vld [vmem:[%s3 + $0x10] sm:$0xff]
  %v110 = vld [vmem:[%s3 + $0x18] sm:$0xff]
  %v111 = vld [vmem:[%s3 + $0x20] sm:$0xff]
  %v112 = vld [vmem:[%s3 + $0x28] sm:$0xff]
  %v113 = vld [vmem:[%s3 + $0x30] sm:$0xff]
  %v114 = vld [vmem:[%s3 + $0x38] sm:$0xff]
  %v115 = vld [vmem:[%s3 + $0x40] sm:$0xff]
  %v116 = vld [vmem:[%s3 + $0x48] sm:$0xff]
  %v117 = vld [vmem:[%s3 + $0x50] sm:$0xff]
  %v118 = vld [vmem:[%s3 + $0x58] sm:$0xff]
  %v119 = vld [vmem:[%s3 + $0x60] sm:$0xff]
  %v120 = vld [vmem:[%s3 + $0x68] sm:$0xff]
  %v121 = vld [vmem:[%s3 + $0x70] sm:$0xff]
  %v122 = vld [vmem:[%s3 + $0x78] sm:$0xff]
  %v123 = vld [vmem:[%s3 + $0x80] sm:$0xff]
  %v124 = vld [vmem:[%s3 + $0x88] sm:$0xff]
  %v125 = vld [vmem:[%s3 + $0x90] sm:$0xff]
  %v126 = vld [vmem:[%s3 + $0x98] sm:$0xff]
  %v127 = vld [vmem:[%s3 + $0xa0] sm:$0xff]
  %v128 = vld [vmem:[%s3 + $0xa8] sm:$0xff]
  %v129 = vld [vmem:[%s3 + $0xb0] sm:$0xff]
  %v130 = vld [vmem:[%s3 + $0xb8] sm:$0xff]
  %v131 = vld [vmem:[%s3 + $0xc0] sm:$0xff]
  %v132 = vld [vmem:[%s3 + $0xc8] sm:$0xff]
  %v133 = vld [vmem:[%s3 + $0xd0] sm:$0xff]
  %v134 = vld [vmem:[%s3 + $0xd8] sm:$0xff]
  %v135 = vld [vmem:[%s3 + $0xe0] sm:$0xff]
  %v136 = vld [vmem:[%s3 + $0xe8] sm:$0xff]
  %v137 = vld [vmem:[%s3 + $0xf0] sm:$0xff]
  %v138 = vld [vmem:[%s3 + $0xf8] sm:$0xff]
  %v139 = vld [vmem:[%s3 + $0x100] sm:$0xff]
  %v140 = vld [vmem:[%s3 + $0x108] sm:$0xff]
  %v141 = vld [vmem:[%s3 + $0x110] sm:$0xff]
  %v142 = vld [vmem:[%s3 + $0x118] sm:$0xff]
  %v143 = vld [vmem:[%s3 + $0x120] sm:$0xff]
  %v144 = vld [vmem:[%s3 + $0x128] sm:$0xff]
  %v145 = vld [vmem:[%s3 + $0x130] sm:$0xff]
  %v146 = vld [vmem:[%s3 + $0x138] sm:$0xff]
  %v147 = vld [vmem:[%s3 + $0x140] sm:$0xff]
  %v148 = vld [vmem:[%s3 + $0x148] sm:$0xff]
  %v149 = vld [vmem:[%s3 + $0x150] sm:$0xff]
  %v150 = vld [vmem:[%s3 + $0x158] sm:$0xff]
  %v151 = vld [vmem:[%s3 + $0x160] sm:$0xff]
  %v152 = vld [vmem:[%s3 + $0x168] sm:$0xff]
  %v153 = vld [vmem:[%s3 + $0x170] sm:$0xff]
  %v154 = vld [vmem:[%s3 + $0x178] sm:$0xff]
  %v155 = vld [vmem:[%s4] sm:$0x3f]
  %v157 = vlaneseq
  %v158 = vshrl.u32 %v157, 7
  %v159 = vsub.s32 0, %v158
  %v160 = vrot.slane %v155, %v159
  %v161 = vlaneseq
  %v162 = vshrl.u32 %v161, 7
  %v163 = vsub.s32 1, %v162
  %v164 = vrot.slane %v155, %v163
  %v165 = vlaneseq
  %v166 = vshrl.u32 %v165, 7
  %v167 = vsub.s32 2, %v166
  %v168 = vrot.slane %v155, %v167
  %v169 = vlaneseq
  %v170 = vshrl.u32 %v169, 7
  %v171 = vsub.s32 3, %v170
  %v172 = vrot.slane %v155, %v171
  %v173 = vlaneseq
  %v174 = vshrl.u32 %v173, 7
  %v175 = vsub.s32 4, %v174
  %v176 = vrot.slane %v155, %v175
  %v177 = vlaneseq
  %v178 = vshrl.u32 %v177, 7
  %v179 = vsub.s32 5, %v178
  %v180 = vrot.slane %v155, %v179
  %v235 = vunpack.c.l.b16 %v107
  %v236 = vunpack.c.h.b16 %v107
  %v237 = vunpack.c.l.b16 %v108
  %v238 = vunpack.c.h.b16 %v108
  %v239 = vunpack.c.l.b16 %v109
  %v240 = vunpack.c.h.b16 %v109
  %v241 = vunpack.c.l.b16 %v110
  %v242 = vunpack.c.h.b16 %v110
  %v243 = vunpack.c.l.b16 %v111
  %v244 = vunpack.c.h.b16 %v111
  %v245 = vunpack.c.l.b16 %v112
  %v246 = vunpack.c.h.b16 %v112
  %v247 = vunpack.c.l.b16 %v113
  %v248 = vunpack.c.h.b16 %v113
  %v249 = vunpack.c.l.b16 %v114
  %v250 = vunpack.c.h.b16 %v114
  %v251 = vunpack.c.l.b16 %v115
  %v252 = vunpack.c.h.b16 %v115
  %v253 = vunpack.c.l.b16 %v116
  %v254 = vunpack.c.h.b16 %v116
  %v255 = vunpack.c.l.b16 %v117
  %v256 = vunpack.c.h.b16 %v117
  %v257 = vunpack.c.l.b16 %v118
  %v258 = vunpack.c.h.b16 %v118
  %v259 = vunpack.c.l.b16 %v119
  %v260 = vunpack.c.h.b16 %v119
  %v261 = vunpack.c.l.b16 %v120
  %v262 = vunpack.c.h.b16 %v120
  %v263 = vunpack.c.l.b16 %v121
  %v264 = vunpack.c.h.b16 %v121
  %v265 = vunpack.c.l.b16 %v122
  %v266 = vunpack.c.h.b16 %v122
  %v267 = vunpack.c.l.b16 %v123
  %v268 = vunpack.c.h.b16 %v123
  %v269 = vunpack.c.l.b16 %v124
  %v270 = vunpack.c.h.b16 %v124
  %v271 = vunpack.c.l.b16 %v125
  %v272 = vunpack.c.h.b16 %v125
  %v273 = vunpack.c.l.b16 %v126
  %v274 = vunpack.c.h.b16 %v126
  %v275 = vunpack.c.l.b16 %v127
  %v276 = vunpack.c.h.b16 %v127
  %v277 = vunpack.c.l.b16 %v128
  %v278 = vunpack.c.h.b16 %v128
  %v279 = vunpack.c.l.b16 %v129
  %v280 = vunpack.c.h.b16 %v129
  %v281 = vunpack.c.l.b16 %v130
  %v282 = vunpack.c.h.b16 %v130
  %v283 = vunpack.c.l.b16 %v131
  %v284 = vunpack.c.h.b16 %v131
  %v285 = vunpack.c.l.b16 %v132
  %v286 = vunpack.c.h.b16 %v132
  %v287 = vunpack.c.l.b16 %v133
  %v288 = vunpack.c.h.b16 %v133
  %v289 = vunpack.c.l.b16 %v134
  %v290 = vunpack.c.h.b16 %v134
  %v291 = vunpack.c.l.b16 %v135
  %v292 = vunpack.c.h.b16 %v135
  %v293 = vunpack.c.l.b16 %v136
  %v294 = vunpack.c.h.b16 %v136
  %v295 = vunpack.c.l.b16 %v137
  %v296 = vunpack.c.h.b16 %v137
  %v297 = vunpack.c.l.b16 %v138
  %v298 = vunpack.c.h.b16 %v138
  %v299 = vunpack.c.l.b16 %v139
  %v300 = vunpack.c.h.b16 %v139
  %v301 = vunpack.c.l.b16 %v140
  %v302 = vunpack.c.h.b16 %v140
  %v303 = vunpack.c.l.b16 %v141
  %v304 = vunpack.c.h.b16 %v141
  %v305 = vunpack.c.l.b16 %v142
  %v306 = vunpack.c.h.b16 %v142
  %v307 = vunpack.c.l.b16 %v143
  %v308 = vunpack.c.h.b16 %v143
  %v309 = vunpack.c.l.b16 %v144
  %v310 = vunpack.c.h.b16 %v144
  %v311 = vunpack.c.l.b16 %v145
  %v312 = vunpack.c.h.b16 %v145
  %v313 = vunpack.c.l.b16 %v146
  %v314 = vunpack.c.h.b16 %v146
  %v315 = vunpack.c.l.b16 %v147
  %v316 = vunpack.c.h.b16 %v147
  %v317 = vunpack.c.l.b16 %v148
  %v318 = vunpack.c.h.b16 %v148
  %v319 = vunpack.c.l.b16 %v149
  %v320 = vunpack.c.h.b16 %v149
  %v321 = vunpack.c.l.b16 %v150
  %v322 = vunpack.c.h.b16 %v150
  %v323 = vunpack.c.l.b16 %v151
  %v324 = vunpack.c.h.b16 %v151
  %v325 = vunpack.c.l.b16 %v152
  %v326 = vunpack.c.h.b16 %v152
  %v327 = vunpack.c.l.b16 %v153
  %v328 = vunpack.c.h.b16 %v153
  %v329 = vunpack.c.l.b16 %v154
  %v330 = vunpack.c.h.b16 %v154
  %v331 = vpack.c.b16 %v241, %v235
  %v332 = vpack.c.b16 %v242, %v236
  %v333 = vpack.c.b16 %v243, %v237
  %v334 = vpack.c.b16 %v244, %v238
  %v335 = vpack.c.b16 %v245, %v239
  %v336 = vpack.c.b16 %v246, %v240
  %v337 = vpack.c.b16 %v253, %v247
  %v338 = vpack.c.b16 %v254, %v248
  %v339 = vpack.c.b16 %v255, %v249
  %v340 = vpack.c.b16 %v256, %v250
  %v341 = vpack.c.b16 %v257, %v251
  %v342 = vpack.c.b16 %v258, %v252
  %v343 = vpack.c.b16 %v265, %v259
  %v344 = vpack.c.b16 %v266, %v260
  %v345 = vpack.c.b16 %v267, %v261
  %v346 = vpack.c.b16 %v268, %v262
  %v347 = vpack.c.b16 %v269, %v263
  %v348 = vpack.c.b16 %v270, %v264
  %v349 = vpack.c.b16 %v277, %v271
  %v350 = vpack.c.b16 %v278, %v272
  %v351 = vpack.c.b16 %v279, %v273
  %v352 = vpack.c.b16 %v280, %v274
  %v353 = vpack.c.b16 %v281, %v275
  %v354 = vpack.c.b16 %v282, %v276
  %v355 = vpack.c.b16 %v289, %v283
  %v356 = vpack.c.b16 %v290, %v284
  %v357 = vpack.c.b16 %v291, %v285
  %v358 = vpack.c.b16 %v292, %v286
  %v359 = vpack.c.b16 %v293, %v287
  %v360 = vpack.c.b16 %v294, %v288
  %v361 = vpack.c.b16 %v301, %v295
  %v362 = vpack.c.b16 %v302, %v296
  %v363 = vpack.c.b16 %v303, %v297
  %v364 = vpack.c.b16 %v304, %v298
  %v365 = vpack.c.b16 %v305, %v299
  %v366 = vpack.c.b16 %v306, %v300
  %v367 = vpack.c.b16 %v313, %v307
  %v368 = vpack.c.b16 %v314, %v308
  %v369 = vpack.c.b16 %v315, %v309
  %v370 = vpack.c.b16 %v316, %v310
  %v371 = vpack.c.b16 %v317, %v311
  %v372 = vpack.c.b16 %v318, %v312
  %v373 = vpack.c.b16 %v325, %v319
  %v374 = vpack.c.b16 %v326, %v320
  %v375 = vpack.c.b16 %v327, %v321
  %v376 = vpack.c.b16 %v328, %v322
  %v377 = vpack.c.b16 %v329, %v323
  %v378 = vpack.c.b16 %v330, %v324
  %427 = vmatprep.subr.bf16.mxu0 %v332
  %428 = vmatpush1.bf16.msra.mxu0 %v331
  %429 = vmatprep.subr.bf16.mxu0 %v338
  %430 = vmatpush1.bf16.msra.mxu0 %v337
  %431 = vmatprep.subr.bf16.mxu0 %v344
  %432 = vmatpush1.bf16.msra.mxu0 %v343
  %433 = vmatprep.subr.bf16.mxu0 %v350
  %434 = vmatpush1.bf16.msra.mxu0 %v349
  %435 = vmatprep.subr.bf16.mxu0 %v356
  %436 = vmatpush1.bf16.msra.mxu0 %v355
  %437 = vmatprep.subr.bf16.mxu0 %v362
  %438 = vmatpush1.bf16.msra.mxu0 %v361
  %439 = vmatprep.subr.bf16.mxu0 %v368
  %440 = vmatpush1.bf16.msra.mxu0 %v367
  %441 = vmatprep.subr.bf16.mxu0 %v374
  %442 = vmatpush1.bf16.msra.mxu0 %v373
  %443 = vmatprep.subr.bf16.mxu0 0
  %444 = vmatpush1.bf16.msra.mxu0 0
  %445 = vmatprep.subr.bf16.mxu0 0
  %446 = vmatpush1.bf16.msra.mxu0 0
  %447 = vmatprep.subr.bf16.mxu0 0
  %448 = vmatpush1.bf16.msra.mxu0 0
  %449 = vmatprep.subr.bf16.mxu0 0
  %450 = vmatpush1.bf16.msra.mxu0 0
  %451 = vmatprep.subr.bf16.mxu0 0
  %452 = vmatpush1.bf16.msra.mxu0 0
  %453 = vmatprep.subr.bf16.mxu0 0
  %454 = vmatpush1.bf16.msra.mxu0 0
  %455 = vmatprep.subr.bf16.mxu0 0
  %456 = vmatpush1.bf16.msra.mxu0 0
  %457 = vmatprep.subr.bf16.mxu0 0
  %458 = vmatpush1.bf16.msra.mxu0 0
  %459 = vmatprep.mubr.bf16.mxu0 0
  %460 = vmatmul.mubr.bf16.gmra.mrb[0].mxu0 %v106
  %v461 = vpop.f32.mrb[0].mxu0
  %v462 = vadd.f32 %v160, %v461
  %v463 = vpop.f32.mrb[0].mxu0
  %v464 = vadd.f32 %v164, %v463
  %v465 = vpop.f32.mrb[0].mxu0
  %v466 = vpop.f32.mrb[0].mxu0
  %467 = vdwg.mxu0
  %468 = vmatprep.subr.bf16.mxu0 %v334
  %469 = vmatpush1.bf16.msra.mxu0 %v333
  %470 = vmatprep.subr.bf16.mxu0 %v340
  %471 = vmatpush1.bf16.msra.mxu0 %v339
  %472 = vmatprep.subr.bf16.mxu0 %v346
  %473 = vmatpush1.bf16.msra.mxu0 %v345
  %474 = vmatprep.subr.bf16.mxu0 %v352
  %475 = vmatpush1.bf16.msra.mxu0 %v351
  %476 = vmatprep.subr.bf16.mxu0 %v358
  %477 = vmatpush1.bf16.msra.mxu0 %v357
  %478 = vmatprep.subr.bf16.mxu0 %v364
  %479 = vmatpush1.bf16.msra.mxu0 %v363
  %480 = vmatprep.subr.bf16.mxu0 %v370
  %481 = vmatpush1.bf16.msra.mxu0 %v369
  %482 = vmatprep.subr.bf16.mxu0 %v376
  %483 = vmatpush1.bf16.msra.mxu0 %v375
  %484 = vmatprep.subr.bf16.mxu0 0
  %485 = vmatpush1.bf16.msra.mxu0 0
  %486 = vmatprep.subr.bf16.mxu0 0
  %487 = vmatpush1.bf16.msra.mxu0 0
  %488 = vmatprep.subr.bf16.mxu0 0
  %489 = vmatpush1.bf16.msra.mxu0 0
  %490 = vmatprep.subr.bf16.mxu0 0
  %491 = vmatpush1.bf16.msra.mxu0 0
  %492 = vmatprep.subr.bf16.mxu0 0
  %493 = vmatpush1.bf16.msra.mxu0 0
  %494 = vmatprep.subr.bf16.mxu0 0
  %495 = vmatpush1.bf16.msra.mxu0 0
  %496 = vmatprep.subr.bf16.mxu0 0
  %497 = vmatpush1.bf16.msra.mxu0 0
  %498 = vmatprep.subr.bf16.mxu0 0
  %499 = vmatpush1.bf16.msra.mxu0 0
  %500 = vmatprep.mubr.bf16.mxu0 0
  %501 = vmatmul.mubr.bf16.gmra.mrb[0].mxu0 %v106
  %v502 = vpop.f32.mrb[0].mxu0
  %v503 = vadd.f32 %v168, %v502
  %v504 = vpop.f32.mrb[0].mxu0
  %v505 = vadd.f32 %v172, %v504
  %v506 = vpop.f32.mrb[0].mxu0
  %v507 = vpop.f32.mrb[0].mxu0
  %508 = vdwg.mxu0
  %509 = vmatprep.subr.bf16.mxu0 %v336
  %510 = vmatpush1.bf16.msra.mxu0 %v335
  %511 = vmatprep.subr.bf16.mxu0 %v342
  %512 = vmatpush1.bf16.msra.mxu0 %v341
  %513 = vmatprep.subr.bf16.mxu0 %v348
  %514 = vmatpush1.bf16.msra.mxu0 %v347
  %515 = vmatprep.subr.bf16.mxu0 %v354
  %516 = vmatpush1.bf16.msra.mxu0 %v353
  %517 = vmatprep.subr.bf16.mxu0 %v360
  %518 = vmatpush1.bf16.msra.mxu0 %v359
  %519 = vmatprep.subr.bf16.mxu0 %v366
  %520 = vmatpush1.bf16.msra.mxu0 %v365
  %521 = vmatprep.subr.bf16.mxu0 %v372
  %522 = vmatpush1.bf16.msra.mxu0 %v371
  %523 = vmatprep.subr.bf16.mxu0 %v378
  %524 = vmatpush1.bf16.msra.mxu0 %v377
  %525 = vmatprep.subr.bf16.mxu0 0
  %526 = vmatpush1.bf16.msra.mxu0 0
  %527 = vmatprep.subr.bf16.mxu0 0
  %528 = vmatpush1.bf16.msra.mxu0 0
  %529 = vmatprep.subr.bf16.mxu0 0
  %530 = vmatpush1.bf16.msra.mxu0 0
  %531 = vmatprep.subr.bf16.mxu0 0
  %532 = vmatpush1.bf16.msra.mxu0 0
  %533 = vmatprep.subr.bf16.mxu0 0
  %534 = vmatpush1.bf16.msra.mxu0 0
  %535 = vmatprep.subr.bf16.mxu0 0
  %536 = vmatpush1.bf16.msra.mxu0 0
  %537 = vmatprep.subr.bf16.mxu0 0
  %538 = vmatpush1.bf16.msra.mxu0 0
  %539 = vmatprep.subr.bf16.mxu0 0
  %540 = vmatpush1.bf16.msra.mxu0 0
  %541 = vmatprep.mubr.bf16.mxu0 0
  %542 = vmatmul.mubr.bf16.gmra.mrb[0].mxu0 %v106
  %v543 = vpop.f32.mrb[0].mxu0
  %v544 = vadd.f32 %v176, %v543
  %v545 = vpop.f32.mrb[0].mxu0
  %v546 = vadd.f32 %v180, %v545
  %v547 = vpop.f32.mrb[0].mxu0
  %v548 = vpop.f32.mrb[0].mxu0
  %549 = vdwg.mxu0
  %550 = vmax.xlane.f32.xlu0 %v462
  %v551 = vpop.xlane.xlu0 %550
  %v552 = vsub.f32 %v462, %v551
  %v553 = vmul.f32 %v552, 1.442695
  %v554 = vpow.pop %v553
  %555 = vadd.xlane.f32.xlu0 %v554
  %v556 = vpop.xlane.xlu0 %555
  %v557 = vrcp.pop %v556
  %v558 = vmul.f32 %v554, %v557
  %559 = vst [vmem:[%s5] sm:$0xff] %v558
  %560 = vmax.xlane.f32.xlu0 %v464
  %v561 = vpop.xlane.xlu0 %560
  %v562 = vsub.f32 %v464, %v561
  %v563 = vmul.f32 %v562, 1.442695
  %v564 = vpow.pop %v563
  %565 = vadd.xlane.f32.xlu0 %v564
  %v566 = vpop.xlane.xlu0 %565
  %v567 = vrcp.pop %v566
  %v568 = vmul.f32 %v564, %v567
  %569 = vst [vmem:[%s5 + $0x8] sm:$0xff] %v568
  %570 = vmax.xlane.f32.xlu0 %v503
  %v571 = vpop.xlane.xlu0 %570
  %v572 = vsub.f32 %v503, %v571
  %v573 = vmul.f32 %v572, 1.442695
  %v574 = vpow.pop %v573
  %575 = vadd.xlane.f32.xlu0 %v574
  %v576 = vpop.xlane.xlu0 %575
  %v577 = vrcp.pop %v576
  %v578 = vmul.f32 %v574, %v577
  %579 = vst [vmem:[%s5 + $0x10] sm:$0xff] %v578
  %580 = vmax.xlane.f32.xlu0 %v505
  %v581 = vpop.xlane.xlu0 %580
  %v582 = vsub.f32 %v505, %v581
  %v583 = vmul.f32 %v582, 1.442695
  %v584 = vpow.pop %v583
  %585 = vadd.xlane.f32.xlu0 %v584
  %v586 = vpop.xlane.xlu0 %585
  %v587 = vrcp.pop %v586
  %v588 = vmul.f32 %v584, %v587
  %589 = vst [vmem:[%s5 + $0x18] sm:$0xff] %v588
  %590 = vmax.xlane.f32.xlu0 %v544
  %v591 = vpop.xlane.xlu0 %590
  %v592 = vsub.f32 %v544, %v591
  %v593 = vmul.f32 %v592, 1.442695
  %v594 = vpow.pop %v593
  %595 = vadd.xlane.f32.xlu0 %v594
  %v596 = vpop.xlane.xlu0 %595
  %v597 = vrcp.pop %v596
  %v598 = vmul.f32 %v594, %v597
  %599 = vst [vmem:[%s5 + $0x20] sm:$0xff] %v598
  %600 = vmax.xlane.f32.xlu0 %v546
  %v601 = vpop.xlane.xlu0 %600
  %v602 = vsub.f32 %v546, %v601
  %v603 = vmul.f32 %v602, 1.442695
  %v604 = vpow.pop %v603
  %605 = vadd.xlane.f32.xlu0 %v604
  %v606 = vpop.xlane.xlu0 %605
  %v607 = vrcp.pop %v606
  %v608 = vmul.f32 %v604, %v607
  %609 = vst [vmem:[%s5 + $0x28] sm:$0xff] %v608
  // Predicated region
  $region22: #{atari_catdqn_forward.7} parent=0 // pred_check
    _
  $region23: #{atari_catdqn_forward.7} parent=0 // pred_check_branch
    %611 = sbr.rel (0) target = $region25
  $region24: #{atari_catdqn_forward.7} parent=0 // pred_region
    _
  $region25: #{atari_catdqn_forward.7} parent=0 // pred_fallthru
    _
  // Predicated region
  $region26: #{atari_catdqn_forward.7} parent=0 // pred_check
    _
  $region27: #{atari_catdqn_forward.7} parent=0 // pred_check_branch
    %613 = sbr.rel (0) target = $region29
  $region28: #{atari_catdqn_forward.7} parent=0 // pred_region
    _
  $region29: #{atari_catdqn_forward.7} parent=0 // pred_fallthru
    _

</llo_original>
